<compile_context>
chip_gen: v7x
topology: tpu7x:2x2x1
jax: 0.10.0
libtpu: 0.0.40
codegen_flags: <defaults>
</compile_context>

<pallas_src>
import numpy as np
import jax
import jax.numpy as jnp
from jax import lax
from jax.experimental import pallas as pl
from jax.experimental.pallas import tpu as pltpu

N_FEAT = 32        # n_feat (must be divisible by GROUPS and REDUCTION)
REDUCTION = 16
GROUPS = 4
KSIZE = 3          # kernel_size, padding=1


def make_rcab_kernel(W):
    """Build the kernel; spatial width W is a static closure constant."""
    K = KSIZE

    def kernel(x_ref, m_ref, w1_ref, b1_ref, w2_ref, b2_ref,
               wd1_ref, bd1_ref, wd2_ref, bd2_ref, o_ref, p_ref):
        _, C, HW = x_ref.shape
        inv_hw = 1.0 / HW                                     # compile-time const
        x = x_ref[0]                                          # (C, HW), lane-dense

        def conv3x3(h, w_ref, b_ref):
            # im2col: 9 shifted + border-masked copies of h, stacked along the
            # sublane (contraction) axis at 8-aligned offsets, then a single
            # K = 9*C MXU matmul against the block-diagonal tap weights.
            for kh in range(K):
                for kw in range(K):
                    t = kh * K + kw
                    s = (kh - 1) * W + (kw - 1)               # static flat shift
                    if s == 0:
                        # center tap: no shift, all-ones mask -> direct store
                        p_ref[t * C:(t + 1) * C, :] = h
                    else:
                        # out[i] = h[i + s]  (jnp.roll semantics, shift >= 0)
                        r = pltpu.roll(h, shift=(-s) % HW, axis=1)
                        p_ref[t * C:(t + 1) * C, :] = r * m_ref[t]   # (C,HW)*(1,HW)
            return jnp.dot(w_ref[...], p_ref[...],
                           preferred_element_type=jnp.float32) + b_ref[...]

        # body: conv -> ReLU -> conv (all in the (C, HW) layout)
        h1 = jnp.maximum(conv3x3(x, w1_ref, b1_ref), 0.0)     # (C, HW)
        h2 = conv3x3(h1, w2_ref, b2_ref)                      # (C, HW)

        # CALayer: global avg-pool + 1x1 squeeze/excite + sigmoid, on VPU/XLU/EUP
        # (keeps the M=1 work off the MXU so it overlaps the conv2 drain).
        y = jnp.sum(h2, axis=1, keepdims=True) * inv_hw       # (C, 1)
        z = jnp.sum(wd1_ref[...] * y, axis=0, keepdims=True) + bd1_ref[...]
        z = jnp.maximum(z, 0.0)                               # (1, C//red)
        att = jax.nn.sigmoid(
            jnp.sum(wd2_ref[...] * z, axis=1, keepdims=True) + bd2_ref[...])  # (C,1)

        # res = CA(h2); res += x   (att lane-broadcasts over HW)
        o_ref[0] = (h2 * att + x).astype(o_ref.dtype)

    return kernel


def conv_weight_matrix(w, groups):
    """(Co, Ci/groups, K, K) grouped weight -> (Co, K*K*Ci) im2col matrix
    with per-tap block-diagonal structure (zeros outside each channel group)."""
    w = np.asarray(w)
    Co, Cig, K, _ = w.shape
    Ci = Cig * groups
    Cog = Co // groups
    wm = np.zeros((Co, K * K * Ci), np.float32)
    for co in range(Co):
        g = co // Cog
        for kh in range(K):
            for kw in range(K):
                t = kh * K + kw
                wm[co, t * Ci + g * Cig: t * Ci + (g + 1) * Cig] = w[co, :, kh, kw]
    return jnp.asarray(wm)


def spatial_masks(H, W, K):
    """(K*K, 1, H*W) f32 validity masks implementing padding=1 zero-padding."""
    HW = H * W
    s = np.arange(HW)
    h, w = s // W, s % W
    m = np.zeros((K * K, 1, HW), np.float32)
    for kh in range(K):
        for kw in range(K):
            dh, dw = kh - 1, kw - 1
            valid = (h + dh >= 0) & (h + dh < H) & (w + dw >= 0) & (w + dw < W)
            m[kh * K + kw, 0, :] = valid.astype(np.float32)
    return jnp.asarray(m)


def rcab_g_forward(x_nchw, params):
    B, C, H, W = x_nchw.shape
    HW = H * W
    Cr = C // REDUCTION
    x = x_nchw.reshape(B, C, HW).astype(jnp.float32)          # CHW-flat (free)

    masks = spatial_masks(H, W, KSIZE)                        # (9, 1, HW)
    w1 = conv_weight_matrix(params['w1'], GROUPS)             # (C, 9C)
    w2 = conv_weight_matrix(params['w2'], GROUPS)             # (C, 9C)
    b1 = params['b1'].reshape(C, 1)
    b2 = params['b2'].reshape(C, 1)
    wd1 = params['wd1'][:, :, 0, 0].T                         # (C, Cr)
    bd1 = params['bd1'].reshape(1, Cr)
    wd2 = params['wd2'][:, :, 0, 0]                           # (C, Cr)
    bd2 = params['bd2'].reshape(C, 1)

    def full_spec(a):
        return pl.BlockSpec(a.shape, lambda b, n=a.ndim: (0,) * n)

    out = pl.pallas_call(
        make_rcab_kernel(W),
        out_shape=jax.ShapeDtypeStruct((B, C, HW), jnp.float32),
        grid_spec=pltpu.PrefetchScalarGridSpec(
            num_scalar_prefetch=0,
            grid=(B,),
            in_specs=[
                pl.BlockSpec((1, C, HW), lambda b: (b, 0, 0)),
                full_spec(masks),
                full_spec(w1), full_spec(b1),
                full_spec(w2), full_spec(b2),
                full_spec(wd1), full_spec(bd1),
                full_spec(wd2), full_spec(bd2),
            ],
            out_specs=pl.BlockSpec((1, C, HW), lambda b: (b, 0, 0)),
            scratch_shapes=[pltpu.VMEM((KSIZE * KSIZE * C, HW), jnp.float32)],
        ),
        compiler_params=pltpu.CompilerParams(
            dimension_semantics=("parallel",)),
    )(x, masks, w1, b1, w2, b2, wd1, bd1, wd2, bd2)

    return out.reshape(B, C, H, W)                            # NCHW


def rcab_g_ref(x, params):
    """Pure-JAX reference matching the PyTorch module (NCHW)."""
    dn = lax.conv_dimension_numbers(x.shape, params['w1'].shape,
                                    ('NCHW', 'OIHW', 'NCHW'))

    def gconv(h, w, b):
        out = lax.conv_general_dilated(h, w, (1, 1), ((1, 1), (1, 1)),
                                       dimension_numbers=dn,
                                       feature_group_count=GROUPS)
        return out + b[None, :, None, None]

    h = jnp.maximum(gconv(x, params['w1'], params['b1']), 0.0)
    h2 = gconv(h, params['w2'], params['b2'])
    y = jnp.mean(h2, axis=(2, 3))                             # (B, C)
    z = jnp.maximum(y @ params['wd1'][:, :, 0, 0].T + params['bd1'], 0.0)
    att = jax.nn.sigmoid(z @ params['wd2'][:, :, 0, 0].T + params['bd2'])
    return h2 * att[:, :, None, None] + x


if __name__ == "__main__":
    key = jax.random.PRNGKey(0)
    ks = jax.random.split(key, 9)
    B, C, H, W = 2, N_FEAT, 16, 16
    Cr = C // REDUCTION

    # deterministic synthetic parameters (shapes from the module __init__)
    params = {
        'w1': jax.random.normal(ks[1], (C, C // GROUPS, KSIZE, KSIZE), jnp.float32) * 0.1,
        'b1': jax.random.normal(ks[2], (C,), jnp.float32) * 0.1,
        'w2': jax.random.normal(ks[3], (C, C // GROUPS, KSIZE, KSIZE), jnp.float32) * 0.1,
        'b2': jax.random.normal(ks[4], (C,), jnp.float32) * 0.1,
        'wd1': jax.random.normal(ks[5], (Cr, C, 1, 1), jnp.float32) * 0.1,
        'bd1': jax.random.normal(ks[6], (Cr,), jnp.float32) * 0.1,
        'wd2': jax.random.normal(ks[7], (C, Cr, 1, 1), jnp.float32) * 0.1,
        'bd2': jax.random.normal(ks[8], (C,), jnp.float32) * 0.1,
    }
    x = jax.random.normal(ks[0], (B, C, H, W), jnp.float32)   # NCHW input

    out = jax.block_until_ready(rcab_g_forward(x, params))
    ref = jax.block_until_ready(rcab_g_ref(x, params))

    assert out.shape == ref.shape == (B, C, H, W)
    np.testing.assert_allclose(np.asarray(out), np.asarray(ref),
                               rtol=1e-4, atol=1e-4)
    print("KERNEL_OK")
</pallas_src>

<mosaic_0001>
module attributes {stable_mosaic.version = 11 : i64} {
  func.func @kernel(%arg0: i32, %arg1: memref<1x32x256xf32, #tpu.memory_space<vmem>>, %arg2: memref<9x1x256xf32, #tpu.memory_space<vmem>>, %arg3: memref<32x288xf32, #tpu.memory_space<vmem>>, %arg4: memref<32x1xf32, #tpu.memory_space<vmem>>, %arg5: memref<32x288xf32, #tpu.memory_space<vmem>>, %arg6: memref<32x1xf32, #tpu.memory_space<vmem>>, %arg7: memref<32x2xf32, #tpu.memory_space<vmem>>, %arg8: memref<1x2xf32, #tpu.memory_space<vmem>>, %arg9: memref<32x2xf32, #tpu.memory_space<vmem>>, %arg10: memref<32x1xf32, #tpu.memory_space<vmem>>, %arg11: memref<1x32x256xf32, #tpu.memory_space<vmem>>, %arg12: memref<288x256xf32, #tpu.memory_space<vmem>>) attributes {dimension_semantics = [#tpu.dimension_semantics<parallel>], iteration_bounds = array<i64: 2>, scalar_prefetch = 0 : i64, scratch_operands = 1 : i64, tpu.core_type = #tpu.core_type<tc>, window_params = [{transform_indices = @transform_0, window_bounds = array<i64: 1, 32, 256>}, {pipeline_mode = #tpu.pipeline_mode<synchronous>, transform_indices = @transform_1, window_bounds = array<i64: 9, 1, 256>}, {pipeline_mode = #tpu.pipeline_mode<synchronous>, transform_indices = @transform_2, window_bounds = array<i64: 32, 288>}, {pipeline_mode = #tpu.pipeline_mode<synchronous>, transform_indices = @transform_3, window_bounds = array<i64: 32, 1>}, {pipeline_mode = #tpu.pipeline_mode<synchronous>, transform_indices = @transform_4, window_bounds = array<i64: 32, 288>}, {pipeline_mode = #tpu.pipeline_mode<synchronous>, transform_indices = @transform_5, window_bounds = array<i64: 32, 1>}, {pipeline_mode = #tpu.pipeline_mode<synchronous>, transform_indices = @transform_6, window_bounds = array<i64: 32, 2>}, {pipeline_mode = #tpu.pipeline_mode<synchronous>, transform_indices = @transform_7, window_bounds = array<i64: 1, 2>}, {pipeline_mode = #tpu.pipeline_mode<synchronous>, transform_indices = @transform_8, window_bounds = array<i64: 32, 2>}, {pipeline_mode = #tpu.pipeline_mode<synchronous>, transform_indices = @transform_9, window_bounds = array<i64: 32, 1>}, {transform_indices = @transform_10, window_bounds = array<i64: 1, 32, 256>}]} {
    %c0 = arith.constant 0 : index
    %c0_0 = arith.constant 0 : index
    %c0_1 = arith.constant 0 : index
    %0 = vector.load %arg1[%c0, %c0_0, %c0_1] : memref<1x32x256xf32, #tpu.memory_space<vmem>>, vector<1x32x256xf32>
    %1 = vector.shape_cast %0 : vector<1x32x256xf32> to vector<32x256xf32>
    %c17_i32 = arith.constant 17 : i32
    %2 = tpu.dynamic_rotate %1 by %c17_i32 dim 1 : vector<32x256xf32>, i32 -> vector<32x256xf32>
    %c0_2 = arith.constant 0 : index
    %c0_3 = arith.constant 0 : index
    %c0_4 = arith.constant 0 : index
    %3 = vector.load %arg2[%c0_2, %c0_3, %c0_4] : memref<9x1x256xf32, #tpu.memory_space<vmem>>, vector<1x1x256xf32>
    %4 = vector.shape_cast %3 : vector<1x1x256xf32> to vector<1x256xf32>
    %5 = vector.broadcast %4 : vector<1x256xf32> to vector<32x256xf32>
    %6 = arith.mulf %2, %5 : vector<32x256xf32>
    %c0_5 = arith.constant 0 : index
    %c0_6 = arith.constant 0 : index
    %7 = vector.load %arg12[%c0_5, %c0_6] : memref<288x256xf32, #tpu.memory_space<vmem>>, vector<32x256xf32>
    tpu.vector_store %arg12[%c0_5, %c0_6], %6 {strides = array<i32>} : memref<288x256xf32, #tpu.memory_space<vmem>>, vector<32x256xf32>,
    %c16_i32 = arith.constant 16 : i32
    %8 = tpu.dynamic_rotate %1 by %c16_i32 dim 1 : vector<32x256xf32>, i32 -> vector<32x256xf32>
    %c1 = arith.constant 1 : index
    %c0_7 = arith.constant 0 : index
    %c0_8 = arith.constant 0 : index
    %9 = vector.load %arg2[%c1, %c0_7, %c0_8] : memref<9x1x256xf32, #tpu.memory_space<vmem>>, vector<1x1x256xf32>
    %10 = vector.shape_cast %9 : vector<1x1x256xf32> to vector<1x256xf32>
    %11 = vector.broadcast %10 : vector<1x256xf32> to vector<32x256xf32>
    %12 = arith.mulf %8, %11 : vector<32x256xf32>
    %c32 = arith.constant 32 : index
    %c0_9 = arith.constant 0 : index
    %13 = vector.load %arg12[%c32, %c0_9] : memref<288x256xf32, #tpu.memory_space<vmem>>, vector<32x256xf32>
    tpu.vector_store %arg12[%c32, %c0_9], %12 {strides = array<i32>} : memref<288x256xf32, #tpu.memory_space<vmem>>, vector<32x256xf32>,
    %c15_i32 = arith.constant 15 : i32
    %14 = tpu.dynamic_rotate %1 by %c15_i32 dim 1 : vector<32x256xf32>, i32 -> vector<32x256xf32>
    %c2 = arith.constant 2 : index
    %c0_10 = arith.constant 0 : index
    %c0_11 = arith.constant 0 : index
    %15 = vector.load %arg2[%c2, %c0_10, %c0_11] : memref<9x1x256xf32, #tpu.memory_space<vmem>>, vector<1x1x256xf32>
    %16 = vector.shape_cast %15 : vector<1x1x256xf32> to vector<1x256xf32>
    %17 = vector.broadcast %16 : vector<1x256xf32> to vector<32x256xf32>
    %18 = arith.mulf %14, %17 : vector<32x256xf32>
    %c64 = arith.constant 64 : index
    %c0_12 = arith.constant 0 : index
    %19 = vector.load %arg12[%c64, %c0_12] : memref<288x256xf32, #tpu.memory_space<vmem>>, vector<32x256xf32>
    tpu.vector_store %arg12[%c64, %c0_12], %18 {strides = array<i32>} : memref<288x256xf32, #tpu.memory_space<vmem>>, vector<32x256xf32>,
    %c1_i32 = arith.constant 1 : i32
    %20 = tpu.dynamic_rotate %1 by %c1_i32 dim 1 : vector<32x256xf32>, i32 -> vector<32x256xf32>
    %c3 = arith.constant 3 : index
    %c0_13 = arith.constant 0 : index
    %c0_14 = arith.constant 0 : index
    %21 = vector.load %arg2[%c3, %c0_13, %c0_14] : memref<9x1x256xf32, #tpu.memory_space<vmem>>, vector<1x1x256xf32>
    %22 = vector.shape_cast %21 : vector<1x1x256xf32> to vector<1x256xf32>
    %23 = vector.broadcast %22 : vector<1x256xf32> to vector<32x256xf32>
    %24 = arith.mulf %20, %23 : vector<32x256xf32>
    %c96 = arith.constant 96 : index
    %c0_15 = arith.constant 0 : index
    %25 = vector.load %arg12[%c96, %c0_15] : memref<288x256xf32, #tpu.memory_space<vmem>>, vector<32x256xf32>
    tpu.vector_store %arg12[%c96, %c0_15], %24 {strides = array<i32>} : memref<288x256xf32, #tpu.memory_space<vmem>>, vector<32x256xf32>,
    %c128 = arith.constant 128 : index
    %c0_16 = arith.constant 0 : index
    %26 = vector.load %arg12[%c128, %c0_16] : memref<288x256xf32, #tpu.memory_space<vmem>>, vector<32x256xf32>
    tpu.vector_store %arg12[%c128, %c0_16], %1 {strides = array<i32>} : memref<288x256xf32, #tpu.memory_space<vmem>>, vector<32x256xf32>,
    %c255_i32 = arith.constant 255 : i32
    %27 = tpu.dynamic_rotate %1 by %c255_i32 dim 1 : vector<32x256xf32>, i32 -> vector<32x256xf32>
    %c5 = arith.constant 5 : index
    %c0_17 = arith.constant 0 : index
    %c0_18 = arith.constant 0 : index
    %28 = vector.load %arg2[%c5, %c0_17, %c0_18] : memref<9x1x256xf32, #tpu.memory_space<vmem>>, vector<1x1x256xf32>
    %29 = vector.shape_cast %28 : vector<1x1x256xf32> to vector<1x256xf32>
    %30 = vector.broadcast %29 : vector<1x256xf32> to vector<32x256xf32>
    %31 = arith.mulf %27, %30 : vector<32x256xf32>
    %c160 = arith.constant 160 : index
    %c0_19 = arith.constant 0 : index
    %32 = vector.load %arg12[%c160, %c0_19] : memref<288x256xf32, #tpu.memory_space<vmem>>, vector<32x256xf32>
    tpu.vector_store %arg12[%c160, %c0_19], %31 {strides = array<i32>} : memref<288x256xf32, #tpu.memory_space<vmem>>, vector<32x256xf32>,
    %c241_i32 = arith.constant 241 : i32
    %33 = tpu.dynamic_rotate %1 by %c241_i32 dim 1 : vector<32x256xf32>, i32 -> vector<32x256xf32>
    %c6 = arith.constant 6 : index
    %c0_20 = arith.constant 0 : index
    %c0_21 = arith.constant 0 : index
    %34 = vector.load %arg2[%c6, %c0_20, %c0_21] : memref<9x1x256xf32, #tpu.memory_space<vmem>>, vector<1x1x256xf32>
    %35 = vector.shape_cast %34 : vector<1x1x256xf32> to vector<1x256xf32>
    %36 = vector.broadcast %35 : vector<1x256xf32> to vector<32x256xf32>
    %37 = arith.mulf %33, %36 : vector<32x256xf32>
    %c192 = arith.constant 192 : index
    %c0_22 = arith.constant 0 : index
    %38 = vector.load %arg12[%c192, %c0_22] : memref<288x256xf32, #tpu.memory_space<vmem>>, vector<32x256xf32>
    tpu.vector_store %arg12[%c192, %c0_22], %37 {strides = array<i32>} : memref<288x256xf32, #tpu.memory_space<vmem>>, vector<32x256xf32>,
    %c240_i32 = arith.constant 240 : i32
    %39 = tpu.dynamic_rotate %1 by %c240_i32 dim 1 : vector<32x256xf32>, i32 -> vector<32x256xf32>
    %c7 = arith.constant 7 : index
    %c0_23 = arith.constant 0 : index
    %c0_24 = arith.constant 0 : index
    %40 = vector.load %arg2[%c7, %c0_23, %c0_24] : memref<9x1x256xf32, #tpu.memory_space<vmem>>, vector<1x1x256xf32>
    %41 = vector.shape_cast %40 : vector<1x1x256xf32> to vector<1x256xf32>
    %42 = vector.broadcast %41 : vector<1x256xf32> to vector<32x256xf32>
    %43 = arith.mulf %39, %42 : vector<32x256xf32>
    %c224 = arith.constant 224 : index
    %c0_25 = arith.constant 0 : index
    %44 = vector.load %arg12[%c224, %c0_25] : memref<288x256xf32, #tpu.memory_space<vmem>>, vector<32x256xf32>
    tpu.vector_store %arg12[%c224, %c0_25], %43 {strides = array<i32>} : memref<288x256xf32, #tpu.memory_space<vmem>>, vector<32x256xf32>,
    %c239_i32 = arith.constant 239 : i32
    %45 = tpu.dynamic_rotate %1 by %c239_i32 dim 1 : vector<32x256xf32>, i32 -> vector<32x256xf32>
    %c8 = arith.constant 8 : index
    %c0_26 = arith.constant 0 : index
    %c0_27 = arith.constant 0 : index
    %46 = vector.load %arg2[%c8, %c0_26, %c0_27] : memref<9x1x256xf32, #tpu.memory_space<vmem>>, vector<1x1x256xf32>
    %47 = vector.shape_cast %46 : vector<1x1x256xf32> to vector<1x256xf32>
    %48 = vector.broadcast %47 : vector<1x256xf32> to vector<32x256xf32>
    %49 = arith.mulf %45, %48 : vector<32x256xf32>
    %c256 = arith.constant 256 : index
    %c0_28 = arith.constant 0 : index
    %50 = vector.load %arg12[%c256, %c0_28] : memref<288x256xf32, #tpu.memory_space<vmem>>, vector<32x256xf32>
    tpu.vector_store %arg12[%c256, %c0_28], %49 {strides = array<i32>} : memref<288x256xf32, #tpu.memory_space<vmem>>, vector<32x256xf32>,
    %c0_29 = arith.constant 0 : index
    %c0_30 = arith.constant 0 : index
    %51 = vector.load %arg3[%c0_29, %c0_30] : memref<32x288xf32, #tpu.memory_space<vmem>>, vector<32x288xf32>
    %c0_31 = arith.constant 0 : index
    %c0_32 = arith.constant 0 : index
    %52 = vector.load %arg12[%c0_31, %c0_32] : memref<288x256xf32, #tpu.memory_space<vmem>>, vector<288x256xf32>
    %cst = arith.constant dense<0.000000e+00> : vector<32x256xf32>
    %53 = tpu.matmul %51, %52, %cst {dimension_numbers = #tpu.dot_dimension_numbers<[1], [0], [0], [1], [0, 0, 1, 1], [], []>} : vector<32x288xf32>, vector<288x256xf32>, vector<32x256xf32> -> vector<32x256xf32>
    %c0_33 = arith.constant 0 : index
    %c0_34 = arith.constant 0 : index
    %54 = vector.load %arg4[%c0_33, %c0_34] : memref<32x1xf32, #tpu.memory_space<vmem>>, vector<32x1xf32>
    %55 = vector.broadcast %54 : vector<32x1xf32> to vector<32x256xf32>
    %56 = arith.addf %53, %55 : vector<32x256xf32>
    %cst_35 = arith.constant 0.000000e+00 : f32
    %57 = vector.broadcast %cst_35 : f32 to vector<32x256xf32>
    %58 = arith.maximumf %56, %57 : vector<32x256xf32>
    %c17_i32_36 = arith.constant 17 : i32
    %59 = tpu.dynamic_rotate %58 by %c17_i32_36 dim 1 : vector<32x256xf32>, i32 -> vector<32x256xf32>
    %c0_37 = arith.constant 0 : index
    %c0_38 = arith.constant 0 : index
    %c0_39 = arith.constant 0 : index
    %60 = vector.load %arg2[%c0_37, %c0_38, %c0_39] : memref<9x1x256xf32, #tpu.memory_space<vmem>>, vector<1x1x256xf32>
    %61 = vector.shape_cast %60 : vector<1x1x256xf32> to vector<1x256xf32>
    %62 = vector.broadcast %61 : vector<1x256xf32> to vector<32x256xf32>
    %63 = arith.mulf %59, %62 : vector<32x256xf32>
    %c0_40 = arith.constant 0 : index
    %c0_41 = arith.constant 0 : index
    %64 = vector.load %arg12[%c0_40, %c0_41] : memref<288x256xf32, #tpu.memory_space<vmem>>, vector<32x256xf32>
    tpu.vector_store %arg12[%c0_40, %c0_41], %63 {strides = array<i32>} : memref<288x256xf32, #tpu.memory_space<vmem>>, vector<32x256xf32>,
    %c16_i32_42 = arith.constant 16 : i32
    %65 = tpu.dynamic_rotate %58 by %c16_i32_42 dim 1 : vector<32x256xf32>, i32 -> vector<32x256xf32>
    %c1_43 = arith.constant 1 : index
    %c0_44 = arith.constant 0 : index
    %c0_45 = arith.constant 0 : index
    %66 = vector.load %arg2[%c1_43, %c0_44, %c0_45] : memref<9x1x256xf32, #tpu.memory_space<vmem>>, vector<1x1x256xf32>
    %67 = vector.shape_cast %66 : vector<1x1x256xf32> to vector<1x256xf32>
    %68 = vector.broadcast %67 : vector<1x256xf32> to vector<32x256xf32>
    %69 = arith.mulf %65, %68 : vector<32x256xf32>
    %c32_46 = arith.constant 32 : index
    %c0_47 = arith.constant 0 : index
    %70 = vector.load %arg12[%c32_46, %c0_47] : memref<288x256xf32, #tpu.memory_space<vmem>>, vector<32x256xf32>
    tpu.vector_store %arg12[%c32_46, %c0_47], %69 {strides = array<i32>} : memref<288x256xf32, #tpu.memory_space<vmem>>, vector<32x256xf32>,
    %c15_i32_48 = arith.constant 15 : i32
    %71 = tpu.dynamic_rotate %58 by %c15_i32_48 dim 1 : vector<32x256xf32>, i32 -> vector<32x256xf32>
    %c2_49 = arith.constant 2 : index
    %c0_50 = arith.constant 0 : index
    %c0_51 = arith.constant 0 : index
    %72 = vector.load %arg2[%c2_49, %c0_50, %c0_51] : memref<9x1x256xf32, #tpu.memory_space<vmem>>, vector<1x1x256xf32>
    %73 = vector.shape_cast %72 : vector<1x1x256xf32> to vector<1x256xf32>
    %74 = vector.broadcast %73 : vector<1x256xf32> to vector<32x256xf32>
    %75 = arith.mulf %71, %74 : vector<32x256xf32>
    %c64_52 = arith.constant 64 : index
    %c0_53 = arith.constant 0 : index
    %76 = vector.load %arg12[%c64_52, %c0_53] : memref<288x256xf32, #tpu.memory_space<vmem>>, vector<32x256xf32>
    tpu.vector_store %arg12[%c64_52, %c0_53], %75 {strides = array<i32>} : memref<288x256xf32, #tpu.memory_space<vmem>>, vector<32x256xf32>,
    %c1_i32_54 = arith.constant 1 : i32
    %77 = tpu.dynamic_rotate %58 by %c1_i32_54 dim 1 : vector<32x256xf32>, i32 -> vector<32x256xf32>
    %c3_55 = arith.constant 3 : index
    %c0_56 = arith.constant 0 : index
    %c0_57 = arith.constant 0 : index
    %78 = vector.load %arg2[%c3_55, %c0_56, %c0_57] : memref<9x1x256xf32, #tpu.memory_space<vmem>>, vector<1x1x256xf32>
    %79 = vector.shape_cast %78 : vector<1x1x256xf32> to vector<1x256xf32>
    %80 = vector.broadcast %79 : vector<1x256xf32> to vector<32x256xf32>
    %81 = arith.mulf %77, %80 : vector<32x256xf32>
    %c96_58 = arith.constant 96 : index
    %c0_59 = arith.constant 0 : index
    %82 = vector.load %arg12[%c96_58, %c0_59] : memref<288x256xf32, #tpu.memory_space<vmem>>, vector<32x256xf32>
    tpu.vector_store %arg12[%c96_58, %c0_59], %81 {strides = array<i32>} : memref<288x256xf32, #tpu.memory_space<vmem>>, vector<32x256xf32>,
    %c128_60 = arith.constant 128 : index
    %c0_61 = arith.constant 0 : index
    %83 = vector.load %arg12[%c128_60, %c0_61] : memref<288x256xf32, #tpu.memory_space<vmem>>, vector<32x256xf32>
    tpu.vector_store %arg12[%c128_60, %c0_61], %58 {strides = array<i32>} : memref<288x256xf32, #tpu.memory_space<vmem>>, vector<32x256xf32>,
    %c255_i32_62 = arith.constant 255 : i32
    %84 = tpu.dynamic_rotate %58 by %c255_i32_62 dim 1 : vector<32x256xf32>, i32 -> vector<32x256xf32>
    %c5_63 = arith.constant 5 : index
    %c0_64 = arith.constant 0 : index
    %c0_65 = arith.constant 0 : index
    %85 = vector.load %arg2[%c5_63, %c0_64, %c0_65] : memref<9x1x256xf32, #tpu.memory_space<vmem>>, vector<1x1x256xf32>
    %86 = vector.shape_cast %85 : vector<1x1x256xf32> to vector<1x256xf32>
    %87 = vector.broadcast %86 : vector<1x256xf32> to vector<32x256xf32>
    %88 = arith.mulf %84, %87 : vector<32x256xf32>
    %c160_66 = arith.constant 160 : index
    %c0_67 = arith.constant 0 : index
    %89 = vector.load %arg12[%c160_66, %c0_67] : memref<288x256xf32, #tpu.memory_space<vmem>>, vector<32x256xf32>
    tpu.vector_store %arg12[%c160_66, %c0_67], %88 {strides = array<i32>} : memref<288x256xf32, #tpu.memory_space<vmem>>, vector<32x256xf32>,
    %c241_i32_68 = arith.constant 241 : i32
    %90 = tpu.dynamic_rotate %58 by %c241_i32_68 dim 1 : vector<32x256xf32>, i32 -> vector<32x256xf32>
    %c6_69 = arith.constant 6 : index
    %c0_70 = arith.constant 0 : index
    %c0_71 = arith.constant 0 : index
    %91 = vector.load %arg2[%c6_69, %c0_70, %c0_71] : memref<9x1x256xf32, #tpu.memory_space<vmem>>, vector<1x1x256xf32>
    %92 = vector.shape_cast %91 : vector<1x1x256xf32> to vector<1x256xf32>
    %93 = vector.broadcast %92 : vector<1x256xf32> to vector<32x256xf32>
    %94 = arith.mulf %90, %93 : vector<32x256xf32>
    %c192_72 = arith.constant 192 : index
    %c0_73 = arith.constant 0 : index
    %95 = vector.load %arg12[%c192_72, %c0_73] : memref<288x256xf32, #tpu.memory_space<vmem>>, vector<32x256xf32>
    tpu.vector_store %arg12[%c192_72, %c0_73], %94 {strides = array<i32>} : memref<288x256xf32, #tpu.memory_space<vmem>>, vector<32x256xf32>,
    %c240_i32_74 = arith.constant 240 : i32
    %96 = tpu.dynamic_rotate %58 by %c240_i32_74 dim 1 : vector<32x256xf32>, i32 -> vector<32x256xf32>
    %c7_75 = arith.constant 7 : index
    %c0_76 = arith.constant 0 : index
    %c0_77 = arith.constant 0 : index
    %97 = vector.load %arg2[%c7_75, %c0_76, %c0_77] : memref<9x1x256xf32, #tpu.memory_space<vmem>>, vector<1x1x256xf32>
    %98 = vector.shape_cast %97 : vector<1x1x256xf32> to vector<1x256xf32>
    %99 = vector.broadcast %98 : vector<1x256xf32> to vector<32x256xf32>
    %100 = arith.mulf %96, %99 : vector<32x256xf32>
    %c224_78 = arith.constant 224 : index
    %c0_79 = arith.constant 0 : index
    %101 = vector.load %arg12[%c224_78, %c0_79] : memref<288x256xf32, #tpu.memory_space<vmem>>, vector<32x256xf32>
    tpu.vector_store %arg12[%c224_78, %c0_79], %100 {strides = array<i32>} : memref<288x256xf32, #tpu.memory_space<vmem>>, vector<32x256xf32>,
    %c239_i32_80 = arith.constant 239 : i32
    %102 = tpu.dynamic_rotate %58 by %c239_i32_80 dim 1 : vector<32x256xf32>, i32 -> vector<32x256xf32>
    %c8_81 = arith.constant 8 : index
    %c0_82 = arith.constant 0 : index
    %c0_83 = arith.constant 0 : index
    %103 = vector.load %arg2[%c8_81, %c0_82, %c0_83] : memref<9x1x256xf32, #tpu.memory_space<vmem>>, vector<1x1x256xf32>
    %104 = vector.shape_cast %103 : vector<1x1x256xf32> to vector<1x256xf32>
    %105 = vector.broadcast %104 : vector<1x256xf32> to vector<32x256xf32>
    %106 = arith.mulf %102, %105 : vector<32x256xf32>
    %c256_84 = arith.constant 256 : index
    %c0_85 = arith.constant 0 : index
    %107 = vector.load %arg12[%c256_84, %c0_85] : memref<288x256xf32, #tpu.memory_space<vmem>>, vector<32x256xf32>
    tpu.vector_store %arg12[%c256_84, %c0_85], %106 {strides = array<i32>} : memref<288x256xf32, #tpu.memory_space<vmem>>, vector<32x256xf32>,
    %c0_86 = arith.constant 0 : index
    %c0_87 = arith.constant 0 : index
    %108 = vector.load %arg5[%c0_86, %c0_87] : memref<32x288xf32, #tpu.memory_space<vmem>>, vector<32x288xf32>
    %c0_88 = arith.constant 0 : index
    %c0_89 = arith.constant 0 : index
    %109 = vector.load %arg12[%c0_88, %c0_89] : memref<288x256xf32, #tpu.memory_space<vmem>>, vector<288x256xf32>
    %cst_90 = arith.constant dense<0.000000e+00> : vector<32x256xf32>
    %110 = tpu.matmul %108, %109, %cst_90 {dimension_numbers = #tpu.dot_dimension_numbers<[1], [0], [0], [1], [0, 0, 1, 1], [], []>} : vector<32x288xf32>, vector<288x256xf32>, vector<32x256xf32> -> vector<32x256xf32>
    %c0_91 = arith.constant 0 : index
    %c0_92 = arith.constant 0 : index
    %111 = vector.load %arg6[%c0_91, %c0_92] : memref<32x1xf32, #tpu.memory_space<vmem>>, vector<32x1xf32>
    %112 = vector.broadcast %111 : vector<32x1xf32> to vector<32x256xf32>
    %113 = arith.addf %110, %112 : vector<32x256xf32>
    %cst_93 = arith.constant dense<0.000000e+00> : vector<32xf32>
    %114 = vector.multi_reduction <add>, %113, %cst_93 [1] : vector<32x256xf32> to vector<32xf32>
    %115 = vector.shape_cast %114 : vector<32xf32> to vector<32x1xf32>
    %cst_94 = arith.constant 3.906250e-03 : f32
    %116 = vector.broadcast %cst_94 : f32 to vector<32x1xf32>
    %117 = arith.mulf %115, %116 : vector<32x1xf32>
    %c0_95 = arith.constant 0 : index
    %c0_96 = arith.constant 0 : index
    %118 = vector.load %arg7[%c0_95, %c0_96] : memref<32x2xf32, #tpu.memory_space<vmem>>, vector<32x2xf32>
    %119 = vector.broadcast %117 : vector<32x1xf32> to vector<32x2xf32>
    %120 = arith.mulf %118, %119 : vector<32x2xf32>
    %cst_97 = arith.constant dense<0.000000e+00> : vector<2xf32>
    %121 = vector.multi_reduction <add>, %120, %cst_97 [0] : vector<32x2xf32> to vector<2xf32>
    %122 = vector.shape_cast %121 : vector<2xf32> to vector<1x2xf32>
    %c0_98 = arith.constant 0 : index
    %c0_99 = arith.constant 0 : index
    %123 = vector.load %arg8[%c0_98, %c0_99] : memref<1x2xf32, #tpu.memory_space<vmem>>, vector<1x2xf32>
    %124 = arith.addf %122, %123 : vector<1x2xf32>
    %cst_100 = arith.constant 0.000000e+00 : f32
    %125 = vector.broadcast %cst_100 : f32 to vector<1x2xf32>
    %126 = arith.maximumf %124, %125 : vector<1x2xf32>
    %c0_101 = arith.constant 0 : index
    %c0_102 = arith.constant 0 : index
    %127 = vector.load %arg9[%c0_101, %c0_102] : memref<32x2xf32, #tpu.memory_space<vmem>>, vector<32x2xf32>
    %128 = vector.broadcast %126 : vector<1x2xf32> to vector<32x2xf32>
    %129 = arith.mulf %127, %128 : vector<32x2xf32>
    %cst_103 = arith.constant dense<0.000000e+00> : vector<32xf32>
    %130 = vector.multi_reduction <add>, %129, %cst_103 [1] : vector<32x2xf32> to vector<32xf32>
    %131 = vector.shape_cast %130 : vector<32xf32> to vector<32x1xf32>
    %c0_104 = arith.constant 0 : index
    %c0_105 = arith.constant 0 : index
    %132 = vector.load %arg10[%c0_104, %c0_105] : memref<32x1xf32, #tpu.memory_space<vmem>>, vector<32x1xf32>
    %133 = arith.addf %131, %132 : vector<32x1xf32>
    %134 = arith.negf %133 : vector<32x1xf32>
    %135 = math.exp %134 : vector<32x1xf32>
    %cst_106 = arith.constant 1.000000e+00 : f32
    %136 = vector.broadcast %cst_106 : f32 to vector<32x1xf32>
    %137 = arith.addf %136, %135 : vector<32x1xf32>
    %138 = arith.divf %136, %137 : vector<32x1xf32>
    %139 = vector.broadcast %138 : vector<32x1xf32> to vector<32x256xf32>
    %140 = arith.mulf %113, %139 : vector<32x256xf32>
    %141 = arith.addf %140, %1 : vector<32x256xf32>
    %c0_107 = arith.constant 0 : index
    %c0_108 = arith.constant 0 : index
    %c0_109 = arith.constant 0 : index
    %142 = vector.load %arg11[%c0_107, %c0_108, %c0_109] : memref<1x32x256xf32, #tpu.memory_space<vmem>>, vector<1x32x256xf32>
    %143 = vector.shape_cast %142 : vector<1x32x256xf32> to vector<32x256xf32>
    %144 = vector.shape_cast %141 : vector<32x256xf32> to vector<1x32x256xf32>
    tpu.vector_store %arg11[%c0_107, %c0_108, %c0_109], %144 {strides = array<i32>} : memref<1x32x256xf32, #tpu.memory_space<vmem>>, vector<1x32x256xf32>,
    return
  }
  func.func @transform_0(%arg0: i32) -> (i32, i32, i32) {
    %c0_i32 = arith.constant 0 : i32
    %c0_i32_0 = arith.constant 0 : i32
    %c0_i32_1 = arith.constant 0 : i32
    return %arg0, %c0_i32, %c0_i32_0 : i32, i32, i32
  }
  func.func @transform_1(%arg0: i32) -> (i32, i32, i32) {
    %c0_i32 = arith.constant 0 : i32
    %c0_i32_0 = arith.constant 0 : i32
    %c0_i32_1 = arith.constant 0 : i32
    %c0_i32_2 = arith.constant 0 : i32
    return %c0_i32, %c0_i32_0, %c0_i32_1 : i32, i32, i32
  }
  func.func @transform_2(%arg0: i32) -> (i32, i32) {
    %c0_i32 = arith.constant 0 : i32
    %c0_i32_0 = arith.constant 0 : i32
    %c0_i32_1 = arith.constant 0 : i32
    return %c0_i32, %c0_i32_0 : i32, i32
  }
  func.func @transform_3(%arg0: i32) -> (i32, i32) {
    %c0_i32 = arith.constant 0 : i32
    %c0_i32_0 = arith.constant 0 : i32
    %c0_i32_1 = arith.constant 0 : i32
    return %c0_i32, %c0_i32_0 : i32, i32
  }
  func.func @transform_4(%arg0: i32) -> (i32, i32) {
    %c0_i32 = arith.constant 0 : i32
    %c0_i32_0 = arith.constant 0 : i32
    %c0_i32_1 = arith.constant 0 : i32
    return %c0_i32, %c0_i32_0 : i32, i32
  }
  func.func @transform_5(%arg0: i32) -> (i32, i32) {
    %c0_i32 = arith.constant 0 : i32
    %c0_i32_0 = arith.constant 0 : i32
    %c0_i32_1 = arith.constant 0 : i32
    return %c0_i32, %c0_i32_0 : i32, i32
  }
  func.func @transform_6(%arg0: i32) -> (i32, i32) {
    %c0_i32 = arith.constant 0 : i32
    %c0_i32_0 = arith.constant 0 : i32
    %c0_i32_1 = arith.constant 0 : i32
    return %c0_i32, %c0_i32_0 : i32, i32
  }
  func.func @transform_7(%arg0: i32) -> (i32, i32) {
    %c0_i32 = arith.constant 0 : i32
    %c0_i32_0 = arith.constant 0 : i32
    %c0_i32_1 = arith.constant 0 : i32
    return %c0_i32, %c0_i32_0 : i32, i32
  }
  func.func @transform_8(%arg0: i32) -> (i32, i32) {
    %c0_i32 = arith.constant 0 : i32
    %c0_i32_0 = arith.constant 0 : i32
    %c0_i32_1 = arith.constant 0 : i32
    return %c0_i32, %c0_i32_0 : i32, i32
  }
  func.func @transform_9(%arg0: i32) -> (i32, i32) {
    %c0_i32 = arith.constant 0 : i32
    %c0_i32_0 = arith.constant 0 : i32
    %c0_i32_1 = arith.constant 0 : i32
    return %c0_i32, %c0_i32_0 : i32, i32
  }
  func.func @transform_10(%arg0: i32) -> (i32, i32, i32) {
    %c0_i32 = arith.constant 0 : i32
    %c0_i32_0 = arith.constant 0 : i32
    %c0_i32_1 = arith.constant 0 : i32
    return %arg0, %c0_i32, %c0_i32_0 : i32, i32, i32
  }
}

</mosaic_0001>

<llo_original>
// kernel: tpu_custom_call.1
$region0: #{tpu_custom_call.1}
  #allocation0 [shape = 'u32[]', space=smem, size = 0x4, offset = 0x4, fixed_abs, tag = 'smem constant byte address 0x4 - core index']
  #allocation1 [shape = 'u32[144,128]{1,0:T(1,128)}', space=vmem, size = 0x12000, scoped, tag = 'internal scratch']
  #allocation2 [shape = 'f32[288,256]{1,0:T(8,128)}', space=vmem, size = 0x48000, scoped, tag = 'scratch operand']
  %s0 = inlined_call_operand.vmem [shape: f32[2,32,256], index: 0, kind: input, shape index: {}]
  %s1 = inlined_call_operand.vmem [shape: f32[9,1,256], index: 1, kind: input, shape index: {}]
  %s2 = inlined_call_operand.hbm [shape: f32[32,288], index: 2, kind: input, shape index: {}]
  %s3 = inlined_call_operand.vmem [shape: f32[32,1], index: 3, kind: input, shape index: {}]
  %s4 = inlined_call_operand.hbm [shape: f32[32,288], index: 4, kind: input, shape index: {}]
  %s5 = inlined_call_operand.vmem [shape: f32[32,1], index: 5, kind: input, shape index: {}]
  %s6 = inlined_call_operand.vmem [shape: f32[32,2], index: 6, kind: input, shape index: {}]
  %s7 = inlined_call_operand.vmem [shape: f32[1,2], index: 7, kind: input, shape index: {}]
  %s8 = inlined_call_operand.vmem [shape: f32[32,2], index: 8, kind: input, shape index: {}]
  %s9 = inlined_call_operand.vmem [shape: f32[32,1], index: 9, kind: input, shape index: {}]
  %s10 = inlined_call_operand.hbm [shape: f32[2,32,256], index: 10, kind: output, shape index: {}]
  %s11 = sld [smem:[#allocation0]]
  $region81: #{tpu_custom_call.1} parent=0
    _
  %s13 = ssub.s32 1, %s11
  %s14 = scalar_select 0, %s13, %s11
  $region1: #{tpu_custom_call.1} parent=0
    #allocation3 [shape = 'u8[49152]{0}', space=vmem, size = 0xc000, scoped, tag = 'input window, operand 2, single buffered']
    #allocation4 [shape = 's32[2]{0}', space=sflag, size = 0x8, scoped, tag = 'scoped memory for tpu_custom_call.1']
    #allocation5 [shape = 's32[2]{0}', space=sflag, size = 0x8, scoped, tag = 'scoped memory for tpu_custom_call.1']
    #allocation6 [shape = 'u8[49152]{0}', space=vmem, size = 0xc000, scoped, tag = 'input window, operand 4, single buffered']
    #allocation7 [shape = 's32[1]{0}', space=sflag, size = 0x4, scoped, tag = 'scoped memory for tpu_custom_call.1']
    #allocation8 [shape = 'u8[65536]{0}', space=vmem, size = 0x10000, scoped, tag = 'output window, operand 0']
    %15 = vsyncpa [#allocation4], 0
    %16 = vsyncpa [#allocation7], 0
    %17 = vsyncpa [#allocation5], 0
    %s18 = scalar_lea.sflag [#allocation5], 1
    %19 = vsyncpa %s18, 0
    loop: start=0, step=1, limit=4
    $region2: #{tpu_custom_call.1} parent=1 // loop_pre_header
      _
    $region3: #{tpu_custom_call.1} parent=1 // loop_header
      %s21 = sphi 0, %s25
      %p22 = scmp.ge.s32.totalorder %s21, 4
      %s31 = sphi 0, %s33
      %s34 = sphi 0, %s31
      %s35 = sphi 0, %s34
      %s51 = sphi 0, %s35
      %s55 = sphi 0, %s55
      %s57 = sphi 0, %s55
      %s58 = sphi 0, %s57
      %s72 = sphi 0, %s58
      %s76 = sphi 0, %s76
      %s78 = sphi 0, %s76
      %s79 = sphi 0, %s78
      %s93 = sphi 0, %s79
      %s97 = sphi 0, %s97
      %s99 = sphi 0, %s97
      %s100 = sphi 0, %s99
      %s114 = sphi 0, %s100
      %s118 = sphi 0, %s118
      %s120 = sphi 0, %s118
      %s121 = sphi 0, %s120
      %s135 = sphi 0, %s121
      %s139 = sphi 0, %s139
      %s141 = sphi 0, %s139
      %s142 = sphi 0, %s141
      %s156 = sphi 0, %s142
      %s160 = sphi 0, %s160
      %s162 = sphi 0, %s160
      %s163 = sphi 0, %s162
      %s177 = sphi 0, %s163
      %s181 = sphi 0, %s181
      %s183 = sphi 0, %s181
      %s184 = sphi 0, %s183
      %s198 = sphi 0, %s184
      %s202 = sphi 0, %s202
      %s204 = sphi 0, %s202
      %s205 = sphi 0, %s204
      %s219 = sphi 0, %s205
      %s223 = sphi 0, %s223
      %s225 = sphi 0, %s223
      %s226 = sphi 0, %s225
      %s240 = sphi 0, %s226
      %s246 = sphi 0, %s248
      %s249 = sphi 0, %s246
      %s250 = sphi 0, %s249
      %s266 = sphi 0, %s250
    $region4: #{tpu_custom_call.1} parent=1 // loop_header_branch
      %24 = sbr.rel (%p22) target = $region8
    $region5: #{tpu_custom_call.1} parent=1 // loop_body
      %s26 = ssub.s32 %s21, 1
      %s27 = ssub.s32 %s21, 2
      %s28 = sadd.s32 %s21, 1
      %s29 = ssub.s32 %s21, %s28
      %p30 = scmp.eq.s32.totalorder %s29, 0
      %s32 = sadd.s32 %s31, 1
      %s33 = scalar_select %p30, %s31, %s32
      %p36 = pneg %p30
      %p37 = scmp.eq.s32.totalorder %s21, 1
      %p38 = por %p36, %p37
      %p39 = scmp.ne.s32.totalorder %s31, %s34
      %p40 = scmp.eq.s32.totalorder %s21, 0
      %p41 = por %p39, %p40
      %p42 = scmp.ne.s32.totalorder %s31, %s34
      %p43 = scmp.eq.s32.totalorder %s26, 1
      %p44 = por %p42, %p43
      %p45 = scmp.ne.s32.totalorder %s34, %s35
      %p46 = scmp.eq.s32.totalorder %s26, 0
      %p47 = por %p45, %p46
      %p48 = scmp.ne.s32.totalorder %s34, %s35
      %p49 = scmp.eq.s32.totalorder %s27, 1
      %p50 = por %p48, %p49
      %p52 = scmp.ne.s32.totalorder %s35, %s51
      %p53 = scmp.eq.s32.totalorder %s27, 0
      %p54 = por %p52, %p53
      %s56 = sadd.s32 %s55, 1
      %p59 = scmp.eq.s32.totalorder %s21, 1
      %p60 = scmp.ne.s32.totalorder %s55, %s57
      %p61 = scmp.eq.s32.totalorder %s21, 0
      %p62 = por %p60, %p61
      %p63 = scmp.ne.s32.totalorder %s55, %s57
      %p64 = scmp.eq.s32.totalorder %s26, 1
      %p65 = por %p63, %p64
      %p66 = scmp.ne.s32.totalorder %s57, %s58
      %p67 = scmp.eq.s32.totalorder %s26, 0
      %p68 = por %p66, %p67
      %p69 = scmp.ne.s32.totalorder %s57, %s58
      %p70 = scmp.eq.s32.totalorder %s27, 1
      %p71 = por %p69, %p70
      %p73 = scmp.ne.s32.totalorder %s58, %s72
      %p74 = scmp.eq.s32.totalorder %s27, 0
      %p75 = por %p73, %p74
      %s77 = sadd.s32 %s76, 1
      %p80 = scmp.eq.s32.totalorder %s21, 1
      %p81 = scmp.ne.s32.totalorder %s76, %s78
      %p82 = scmp.eq.s32.totalorder %s21, 0
      %p83 = por %p81, %p82
      %p84 = scmp.ne.s32.totalorder %s76, %s78
      %p85 = scmp.eq.s32.totalorder %s26, 1
      %p86 = por %p84, %p85
      %p87 = scmp.ne.s32.totalorder %s78, %s79
      %p88 = scmp.eq.s32.totalorder %s26, 0
      %p89 = por %p87, %p88
      %p90 = scmp.ne.s32.totalorder %s78, %s79
      %p91 = scmp.eq.s32.totalorder %s27, 1
      %p92 = por %p90, %p91
      %p94 = scmp.ne.s32.totalorder %s79, %s93
      %p95 = scmp.eq.s32.totalorder %s27, 0
      %p96 = por %p94, %p95
      %s98 = sadd.s32 %s97, 1
      %p101 = scmp.eq.s32.totalorder %s21, 1
      %p102 = scmp.ne.s32.totalorder %s97, %s99
      %p103 = scmp.eq.s32.totalorder %s21, 0
      %p104 = por %p102, %p103
      %p105 = scmp.ne.s32.totalorder %s97, %s99
      %p106 = scmp.eq.s32.totalorder %s26, 1
      %p107 = por %p105, %p106
      %p108 = scmp.ne.s32.totalorder %s99, %s100
      %p109 = scmp.eq.s32.totalorder %s26, 0
      %p110 = por %p108, %p109
      %p111 = scmp.ne.s32.totalorder %s99, %s100
      %p112 = scmp.eq.s32.totalorder %s27, 1
      %p113 = por %p111, %p112
      %p115 = scmp.ne.s32.totalorder %s100, %s114
      %p116 = scmp.eq.s32.totalorder %s27, 0
      %p117 = por %p115, %p116
      %s119 = sadd.s32 %s118, 1
      %p122 = scmp.eq.s32.totalorder %s21, 1
      %p123 = scmp.ne.s32.totalorder %s118, %s120
      %p124 = scmp.eq.s32.totalorder %s21, 0
      %p125 = por %p123, %p124
      %p126 = scmp.ne.s32.totalorder %s118, %s120
      %p127 = scmp.eq.s32.totalorder %s26, 1
      %p128 = por %p126, %p127
      %p129 = scmp.ne.s32.totalorder %s120, %s121
      %p130 = scmp.eq.s32.totalorder %s26, 0
      %p131 = por %p129, %p130
      %p132 = scmp.ne.s32.totalorder %s120, %s121
      %p133 = scmp.eq.s32.totalorder %s27, 1
      %p134 = por %p132, %p133
      %p136 = scmp.ne.s32.totalorder %s121, %s135
      %p137 = scmp.eq.s32.totalorder %s27, 0
      %p138 = por %p136, %p137
      %s140 = sadd.s32 %s139, 1
      %p143 = scmp.eq.s32.totalorder %s21, 1
      %p144 = scmp.ne.s32.totalorder %s139, %s141
      %p145 = scmp.eq.s32.totalorder %s21, 0
      %p146 = por %p144, %p145
      %p147 = scmp.ne.s32.totalorder %s139, %s141
      %p148 = scmp.eq.s32.totalorder %s26, 1
      %p149 = por %p147, %p148
      %p150 = scmp.ne.s32.totalorder %s141, %s142
      %p151 = scmp.eq.s32.totalorder %s26, 0
      %p152 = por %p150, %p151
      %p153 = scmp.ne.s32.totalorder %s141, %s142
      %p154 = scmp.eq.s32.totalorder %s27, 1
      %p155 = por %p153, %p154
      %p157 = scmp.ne.s32.totalorder %s142, %s156
      %p158 = scmp.eq.s32.totalorder %s27, 0
      %p159 = por %p157, %p158
      %s161 = sadd.s32 %s160, 1
      %p164 = scmp.eq.s32.totalorder %s21, 1
      %p165 = scmp.ne.s32.totalorder %s160, %s162
      %p166 = scmp.eq.s32.totalorder %s21, 0
      %p167 = por %p165, %p166
      %p168 = scmp.ne.s32.totalorder %s160, %s162
      %p169 = scmp.eq.s32.totalorder %s26, 1
      %p170 = por %p168, %p169
      %p171 = scmp.ne.s32.totalorder %s162, %s163
      %p172 = scmp.eq.s32.totalorder %s26, 0
      %p173 = por %p171, %p172
      %p174 = scmp.ne.s32.totalorder %s162, %s163
      %p175 = scmp.eq.s32.totalorder %s27, 1
      %p176 = por %p174, %p175
      %p178 = scmp.ne.s32.totalorder %s163, %s177
      %p179 = scmp.eq.s32.totalorder %s27, 0
      %p180 = por %p178, %p179
      %s182 = sadd.s32 %s181, 1
      %p185 = scmp.eq.s32.totalorder %s21, 1
      %p186 = scmp.ne.s32.totalorder %s181, %s183
      %p187 = scmp.eq.s32.totalorder %s21, 0
      %p188 = por %p186, %p187
      %p189 = scmp.ne.s32.totalorder %s181, %s183
      %p190 = scmp.eq.s32.totalorder %s26, 1
      %p191 = por %p189, %p190
      %p192 = scmp.ne.s32.totalorder %s183, %s184
      %p193 = scmp.eq.s32.totalorder %s26, 0
      %p194 = por %p192, %p193
      %p195 = scmp.ne.s32.totalorder %s183, %s184
      %p196 = scmp.eq.s32.totalorder %s27, 1
      %p197 = por %p195, %p196
      %p199 = scmp.ne.s32.totalorder %s184, %s198
      %p200 = scmp.eq.s32.totalorder %s27, 0
      %p201 = por %p199, %p200
      %s203 = sadd.s32 %s202, 1
      %p206 = scmp.eq.s32.totalorder %s21, 1
      %p207 = scmp.ne.s32.totalorder %s202, %s204
      %p208 = scmp.eq.s32.totalorder %s21, 0
      %p209 = por %p207, %p208
      %p210 = scmp.ne.s32.totalorder %s202, %s204
      %p211 = scmp.eq.s32.totalorder %s26, 1
      %p212 = por %p210, %p211
      %p213 = scmp.ne.s32.totalorder %s204, %s205
      %p214 = scmp.eq.s32.totalorder %s26, 0
      %p215 = por %p213, %p214
      %p216 = scmp.ne.s32.totalorder %s204, %s205
      %p217 = scmp.eq.s32.totalorder %s27, 1
      %p218 = por %p216, %p217
      %p220 = scmp.ne.s32.totalorder %s205, %s219
      %p221 = scmp.eq.s32.totalorder %s27, 0
      %p222 = por %p220, %p221
      %s224 = sadd.s32 %s223, 1
      %p227 = scmp.eq.s32.totalorder %s21, 1
      %p228 = scmp.ne.s32.totalorder %s223, %s225
      %p229 = scmp.eq.s32.totalorder %s21, 0
      %p230 = por %p228, %p229
      %p231 = scmp.ne.s32.totalorder %s223, %s225
      %p232 = scmp.eq.s32.totalorder %s26, 1
      %p233 = por %p231, %p232
      %p234 = scmp.ne.s32.totalorder %s225, %s226
      %p235 = scmp.eq.s32.totalorder %s26, 0
      %p236 = por %p234, %p235
      %p237 = scmp.ne.s32.totalorder %s225, %s226
      %p238 = scmp.eq.s32.totalorder %s27, 1
      %p239 = por %p237, %p238
      %p241 = scmp.ne.s32.totalorder %s226, %s240
      %p242 = scmp.eq.s32.totalorder %s27, 0
      %p243 = por %p241, %p242
      %s244 = ssub.s32 %s21, %s28
      %p245 = scmp.eq.s32.totalorder %s244, 0
      %s247 = sadd.s32 %s246, 1
      %s248 = scalar_select %p245, %s246, %s247
      %p251 = pneg %p245
      %p252 = scmp.eq.s32.totalorder %s21, 1
      %p253 = por %p251, %p252
      %p254 = scmp.ne.s32.totalorder %s246, %s249
      %p255 = scmp.eq.s32.totalorder %s21, 0
      %p256 = por %p254, %p255
      %p257 = scmp.ne.s32.totalorder %s246, %s249
      %p258 = scmp.eq.s32.totalorder %s26, 1
      %p259 = por %p257, %p258
      %p260 = scmp.ne.s32.totalorder %s249, %s250
      %p261 = scmp.eq.s32.totalorder %s26, 0
      %p262 = por %p260, %p261
      %p263 = scmp.ne.s32.totalorder %s249, %s250
      %p264 = scmp.eq.s32.totalorder %s27, 1
      %p265 = por %p263, %p264
      %p267 = scmp.ne.s32.totalorder %s250, %s266
      %p268 = scmp.eq.s32.totalorder %s27, 0
      %p269 = por %p267, %p268
      %p270 = scmp.le.s32.totalorder 1, %s21
      %p271 = scmp.lt.s32.totalorder %s21, 3
      %p272 = pnand %p270, %p271
      %p273 = pneg %p272
      // Predicated region
      $region9: #{tpu_custom_call.1} parent=5 // pred_check
        _
      $region10: #{tpu_custom_call.1} parent=5 // pred_check_branch
        %275 = sbr.rel (%p272) target = $region12
      $region11: #{tpu_custom_call.1} parent=5 // pred_region
        %s276 = ssub.s32 %s21, 1
        // Predicated region
        $region13: #{tpu_custom_call.1} parent=11 // pred_check
          %p277 = pneg %p68
        $region14: #{tpu_custom_call.1} parent=11 // pred_check_branch
          %279 = sbr.rel (%p277) target = $region16
        $region15: #{tpu_custom_call.1} parent=11 // pred_region
          _
        $region16: #{tpu_custom_call.1} parent=11 // pred_fallthru
          _
        // Predicated region
        $region17: #{tpu_custom_call.1} parent=11 // pred_check
          %p280 = pneg %p89
        $region18: #{tpu_custom_call.1} parent=11 // pred_check_branch
          %282 = sbr.rel (%p280) target = $region20
        $region19: #{tpu_custom_call.1} parent=11 // pred_region
          %s284 = ssub.s32 1536, 1536
          %285 = vsyncadd [#allocation4], %s284
          %s286 = sshll.u32 [#allocation3], 4
          %s287 = int_to_ptr.vmem [resolvable:$true] %s286
          %292 = dma.hbm_to_vmem [thread:$0]  %s2, 1536, %s287, [#allocation4], 384, 384, 24
        $region20: #{tpu_custom_call.1} parent=11 // pred_fallthru
          _
        // Predicated region
        $region21: #{tpu_custom_call.1} parent=11 // pred_check
          %p293 = pneg %p110
        $region22: #{tpu_custom_call.1} parent=11 // pred_check_branch
          %295 = sbr.rel (%p293) target = $region24
        $region23: #{tpu_custom_call.1} parent=11 // pred_region
          _
        $region24: #{tpu_custom_call.1} parent=11 // pred_fallthru
          _
        // Predicated region
        $region25: #{tpu_custom_call.1} parent=11 // pred_check
          %p296 = pneg %p131
        $region26: #{tpu_custom_call.1} parent=11 // pred_check_branch
          %298 = sbr.rel (%p296) target = $region28
        $region27: #{tpu_custom_call.1} parent=11 // pred_region
          %s300 = ssub.s32 1536, 1536
          %301 = vsyncadd [#allocation7], %s300
          %s302 = sshll.u32 [#allocation6], 4
          %s303 = int_to_ptr.vmem [resolvable:$true] %s302
          %308 = dma.hbm_to_vmem [thread:$0]  %s4, 1536, %s303, [#allocation7], 384, 384, 24
        $region28: #{tpu_custom_call.1} parent=11 // pred_fallthru
          _
        // Predicated region
        $region29: #{tpu_custom_call.1} parent=11 // pred_check
          %p309 = pneg %p152
        $region30: #{tpu_custom_call.1} parent=11 // pred_check_branch
          %311 = sbr.rel (%p309) target = $region32
        $region31: #{tpu_custom_call.1} parent=11 // pred_region
          _
        $region32: #{tpu_custom_call.1} parent=11 // pred_fallthru
          _
        // Predicated region
        $region33: #{tpu_custom_call.1} parent=11 // pred_check
          %p312 = pneg %p173
        $region34: #{tpu_custom_call.1} parent=11 // pred_check_branch
          %314 = sbr.rel (%p312) target = $region36
        $region35: #{tpu_custom_call.1} parent=11 // pred_region
          _
        $region36: #{tpu_custom_call.1} parent=11 // pred_fallthru
          _
        // Predicated region
        $region37: #{tpu_custom_call.1} parent=11 // pred_check
          %p315 = pneg %p194
        $region38: #{tpu_custom_call.1} parent=11 // pred_check_branch
          %317 = sbr.rel (%p315) target = $region40
        $region39: #{tpu_custom_call.1} parent=11 // pred_region
          _
        $region40: #{tpu_custom_call.1} parent=11 // pred_fallthru
          _
        // Predicated region
        $region41: #{tpu_custom_call.1} parent=11 // pred_check
          %p318 = pneg %p215
        $region42: #{tpu_custom_call.1} parent=11 // pred_check_branch
          %320 = sbr.rel (%p318) target = $region44
        $region43: #{tpu_custom_call.1} parent=11 // pred_region
          _
        $region44: #{tpu_custom_call.1} parent=11 // pred_fallthru
          _
        // Predicated region
        $region45: #{tpu_custom_call.1} parent=11 // pred_check
          %p321 = pneg %p236
        $region46: #{tpu_custom_call.1} parent=11 // pred_check_branch
          %323 = sbr.rel (%p321) target = $region48
        $region47: #{tpu_custom_call.1} parent=11 // pred_region
          _
        $region48: #{tpu_custom_call.1} parent=11 // pred_fallthru
          _
      $region12: #{tpu_custom_call.1} parent=5 // pred_fallthru
        _
      %p324 = scmp.lt.s32.totalorder %s21, 2
      // Predicated region
      $region49: #{tpu_custom_call.1} parent=5 // pred_check
        %p325 = pneg %p324
      $region50: #{tpu_custom_call.1} parent=5 // pred_check_branch
        %327 = sbr.rel (%p325) target = $region52
      $region51: #{tpu_custom_call.1} parent=5 // pred_region
        // Predicated region
        $region53: #{tpu_custom_call.1} parent=51 // pred_check
          %p328 = pneg %p41
        $region54: #{tpu_custom_call.1} parent=51 // pred_check_branch
          %330 = sbr.rel (%p328) target = $region56
        $region55: #{tpu_custom_call.1} parent=51 // pred_region
          %p331 = scmp.lt.s32.totalorder %s21, 1
          %s332 = scalar_select %p331, %s21, 1
          %s333 = smul.addr %s332, 8
          %s334 = smul.addr %s333, 8
          %s335 = scalar_lea.vmem %s0, %s334
        $region56: #{tpu_custom_call.1} parent=51 // pred_fallthru
          _
      $region52: #{tpu_custom_call.1} parent=5 // pred_fallthru
        _
      %p336 = scmp.le.s32.totalorder 1, %s21
      %p337 = scmp.lt.s32.totalorder %s21, 3
      %p338 = pnand %p336, %p337
      %p339 = pneg %p338
      // Predicated region
      $region57: #{tpu_custom_call.1} parent=5 // pred_check
        _
      $region58: #{tpu_custom_call.1} parent=5 // pred_check_branch
        %341 = sbr.rel (%p338) target = $region60
      $region59: #{tpu_custom_call.1} parent=5 // pred_region
        %s342 = ssub.s32 %s21, 1
        // Predicated region
        $region61: #{tpu_custom_call.1} parent=59 // pred_check
          %p343 = pneg %p89
        $region62: #{tpu_custom_call.1} parent=59 // pred_check_branch
          %345 = sbr.rel (%p343) target = $region64
        $region63: #{tpu_custom_call.1} parent=59 // pred_region
          %346 = dma.done [#allocation4], 1536
        $region64: #{tpu_custom_call.1} parent=59 // pred_fallthru
          _
        // Predicated region
        $region65: #{tpu_custom_call.1} parent=59 // pred_check
          %p347 = pneg %p131
        $region66: #{tpu_custom_call.1} parent=59 // pred_check_branch
          %349 = sbr.rel (%p347) target = $region68
        $region67: #{tpu_custom_call.1} parent=59 // pred_region
          %350 = dma.done [#allocation7], 1536
        $region68: #{tpu_custom_call.1} parent=59 // pred_fallthru
          _
        %p351 = scmp.lt.s32.totalorder %s26, 1
        %s352 = scalar_select %p351, %s26, 1
        %s353 = smul.addr %s352, 8
        %s354 = smul.addr %s353, 8
        %s355 = scalar_lea.vmem %s0, %s354
        %p356 = pneg %p47
        %p357 = pneg %p44
        %p358 = pneg %p68
        %p359 = pneg %p65
        %p360 = pneg %p89
        %p361 = pneg %p86
        %p362 = pneg %p110
        %p363 = pneg %p107
        %p364 = pneg %p131
        %p365 = pneg %p128
        %p366 = pneg %p152
        %p367 = pneg %p149
        %p368 = pneg %p173
        %p369 = pneg %p170
        %p370 = pneg %p194
        %p371 = pneg %p191
        %p372 = pneg %p215
        %p373 = pneg %p212
        %p374 = pneg %p236
        %p375 = pneg %p233
        %p376 = pneg %p262
        %p377 = pneg %p259
        %s378 = sand.u32 %s249, 1
        %s379 = scalar_lea.sflag [#allocation5], %s378
        %s380 = sand.u32 %s249, 1
        %s381 = smul.addr %s380, 64
        %s382 = scalar_lea.vmem [#allocation8], %s381
        %p383 = scmp.lt.s32.totalorder %s26, 1
        %s384 = scalar_select %p383, %s26, 1
        %s385 = smul.addr %s384, 8
        %s386 = smul.addr %s385, 8
        %s387 = scalar_lea.vmem %s0, %s386
        %v388 = vld [vmem:[%s387] sm:$0xff]
        %v389 = vld [vmem:[%s387 + $0x8] sm:$0xff]
        %v390 = vld [vmem:[%s387 + $0x10] sm:$0xff]
        %v391 = vld [vmem:[%s387 + $0x18] sm:$0xff]
        %v392 = vld [vmem:[%s387 + $0x20] sm:$0xff]
        %v393 = vld [vmem:[%s387 + $0x28] sm:$0xff]
        %v394 = vld [vmem:[%s387 + $0x30] sm:$0xff]
        %v395 = vld [vmem:[%s387 + $0x38] sm:$0xff]
        %396 = vrot.lane.b32.xlu0 %v388, 17
        %v397 = vpop.permute.xlu0 %396
        %398 = vrot.lane.b32.xlu0 %v390, 17
        %v399 = vpop.permute.xlu0 %398
        %400 = vrot.lane.b32.xlu0 %v392, 17
        %v401 = vpop.permute.xlu0 %400
        %402 = vrot.lane.b32.xlu0 %v394, 17
        %v403 = vpop.permute.xlu0 %402
        %404 = vrot.lane.b32.xlu0 %v389, 17
        %v405 = vpop.permute.xlu0 %404
        %406 = vrot.lane.b32.xlu0 %v391, 17
        %v407 = vpop.permute.xlu0 %406
        %408 = vrot.lane.b32.xlu0 %v393, 17
        %v409 = vpop.permute.xlu0 %408
        %410 = vrot.lane.b32.xlu0 %v395, 17
        %v411 = vpop.permute.xlu0 %410
        %v412 = vlaneseq
        %v413 = vand.u32 %v412, 127
        %vm414 = vcmp.lt.s32.totalorder %v413, 17
        %v415 = vsel %vm414, %v397, %v405
        %v416 = vsel %vm414, %v399, %v407
        %v417 = vsel %vm414, %v401, %v409
        %v418 = vsel %vm414, %v403, %v411
        %v419 = vsel %vm414, %v405, %v397
        %v420 = vsel %vm414, %v407, %v399
        %v421 = vsel %vm414, %v409, %v401
        %v422 = vsel %vm414, %v411, %v403
        %v423 = vld [vmem:[%s1] sm:$0x3]
        %v425 = vlaneseq
        %v426 = vshrl.u32 %v425, 7
        %v427 = vsub.s32 0, %v426
        %v428 = vrot.slane %v423, %v427
        %v429 = vlaneseq
        %v430 = vshrl.u32 %v429, 7
        %v431 = vsub.s32 1, %v430
        %v432 = vrot.slane %v423, %v431
        %v435 = vmul.f32 %v419, %v428
        %v436 = vmul.f32 %v415, %v432
        %v437 = vmul.f32 %v420, %v428
        %v438 = vmul.f32 %v416, %v432
        %v439 = vmul.f32 %v421, %v428
        %v440 = vmul.f32 %v417, %v432
        %v441 = vmul.f32 %v422, %v428
        %v442 = vmul.f32 %v418, %v432
        %443 = vst [vmem:[#allocation2] sm:$0xff] %v435
        %444 = vst [vmem:[#allocation2 + $0x8] sm:$0xff] %v436
        %445 = vst [vmem:[#allocation2 + $0x10] sm:$0xff] %v437
        %446 = vst [vmem:[#allocation2 + $0x18] sm:$0xff] %v438
        %447 = vst [vmem:[#allocation2 + $0x20] sm:$0xff] %v439
        %448 = vst [vmem:[#allocation2 + $0x28] sm:$0xff] %v440
        %449 = vst [vmem:[#allocation2 + $0x30] sm:$0xff] %v441
        %450 = vst [vmem:[#allocation2 + $0x38] sm:$0xff] %v442
        %451 = vrot.lane.b32.xlu0 %v388, 16
        %v452 = vpop.permute.xlu0 %451
        %453 = vrot.lane.b32.xlu0 %v390, 16
        %v454 = vpop.permute.xlu0 %453
        %455 = vrot.lane.b32.xlu0 %v392, 16
        %v456 = vpop.permute.xlu0 %455
        %457 = vrot.lane.b32.xlu0 %v394, 16
        %v458 = vpop.permute.xlu0 %457
        %459 = vrot.lane.b32.xlu0 %v389, 16
        %v460 = vpop.permute.xlu0 %459
        %461 = vrot.lane.b32.xlu0 %v391, 16
        %v462 = vpop.permute.xlu0 %461
        %463 = vrot.lane.b32.xlu0 %v393, 16
        %v464 = vpop.permute.xlu0 %463
        %465 = vrot.lane.b32.xlu0 %v395, 16
        %v466 = vpop.permute.xlu0 %465
        %vm467 = vcmp.lt.s32.totalorder %v413, 16
        %v468 = vsel %vm467, %v452, %v460
        %v469 = vsel %vm467, %v454, %v462
        %v470 = vsel %vm467, %v456, %v464
        %v471 = vsel %vm467, %v458, %v466
        %v472 = vsel %vm467, %v460, %v452
        %v473 = vsel %vm467, %v462, %v454
        %v474 = vsel %vm467, %v464, %v456
        %v475 = vsel %vm467, %v466, %v458
        %s476 = scalar_lea.vmem %s1, 2
        %v477 = vld [vmem:[%s476] sm:$0x3]
        %v479 = vlaneseq
        %v480 = vshrl.u32 %v479, 7
        %v481 = vsub.s32 0, %v480
        %v482 = vrot.slane %v477, %v481
        %v483 = vlaneseq
        %v484 = vshrl.u32 %v483, 7
        %v485 = vsub.s32 1, %v484
        %v486 = vrot.slane %v477, %v485
        %v489 = vmul.f32 %v472, %v482
        %v490 = vmul.f32 %v468, %v486
        %v491 = vmul.f32 %v473, %v482
        %v492 = vmul.f32 %v469, %v486
        %v493 = vmul.f32 %v474, %v482
        %v494 = vmul.f32 %v470, %v486
        %v495 = vmul.f32 %v475, %v482
        %v496 = vmul.f32 %v471, %v486
        %497 = vst [vmem:[#allocation2 + $0x40] sm:$0xff] %v489
        %498 = vst [vmem:[#allocation2 + $0x48] sm:$0xff] %v490
        %499 = vst [vmem:[#allocation2 + $0x50] sm:$0xff] %v491
        %500 = vst [vmem:[#allocation2 + $0x58] sm:$0xff] %v492
        %501 = vst [vmem:[#allocation2 + $0x60] sm:$0xff] %v493
        %502 = vst [vmem:[#allocation2 + $0x68] sm:$0xff] %v494
        %503 = vst [vmem:[#allocation2 + $0x70] sm:$0xff] %v495
        %504 = vst [vmem:[#allocation2 + $0x78] sm:$0xff] %v496
        %505 = vrot.lane.b32.xlu0 %v388, 15
        %v506 = vpop.permute.xlu0 %505
        %507 = vrot.lane.b32.xlu0 %v390, 15
        %v508 = vpop.permute.xlu0 %507
        %509 = vrot.lane.b32.xlu0 %v392, 15
        %v510 = vpop.permute.xlu0 %509
        %511 = vrot.lane.b32.xlu0 %v394, 15
        %v512 = vpop.permute.xlu0 %511
        %513 = vrot.lane.b32.xlu0 %v389, 15
        %v514 = vpop.permute.xlu0 %513
        %515 = vrot.lane.b32.xlu0 %v391, 15
        %v516 = vpop.permute.xlu0 %515
        %517 = vrot.lane.b32.xlu0 %v393, 15
        %v518 = vpop.permute.xlu0 %517
        %519 = vrot.lane.b32.xlu0 %v395, 15
        %v520 = vpop.permute.xlu0 %519
        %vm521 = vcmp.lt.s32.totalorder %v413, 15
        %v522 = vsel %vm521, %v506, %v514
        %v523 = vsel %vm521, %v508, %v516
        %v524 = vsel %vm521, %v510, %v518
        %v525 = vsel %vm521, %v512, %v520
        %v526 = vsel %vm521, %v514, %v506
        %v527 = vsel %vm521, %v516, %v508
        %v528 = vsel %vm521, %v518, %v510
        %v529 = vsel %vm521, %v520, %v512
        %s530 = scalar_lea.vmem %s1, 4
        %v531 = vld [vmem:[%s530] sm:$0x3]
        %v533 = vlaneseq
        %v534 = vshrl.u32 %v533, 7
        %v535 = vsub.s32 0, %v534
        %v536 = vrot.slane %v531, %v535
        %v537 = vlaneseq
        %v538 = vshrl.u32 %v537, 7
        %v539 = vsub.s32 1, %v538
        %v540 = vrot.slane %v531, %v539
        %v543 = vmul.f32 %v526, %v536
        %v544 = vmul.f32 %v522, %v540
        %v545 = vmul.f32 %v527, %v536
        %v546 = vmul.f32 %v523, %v540
        %v547 = vmul.f32 %v528, %v536
        %v548 = vmul.f32 %v524, %v540
        %v549 = vmul.f32 %v529, %v536
        %v550 = vmul.f32 %v525, %v540
        %551 = vst [vmem:[#allocation2 + $0x80] sm:$0xff] %v543
        %552 = vst [vmem:[#allocation2 + $0x88] sm:$0xff] %v544
        %553 = vst [vmem:[#allocation2 + $0x90] sm:$0xff] %v545
        %554 = vst [vmem:[#allocation2 + $0x98] sm:$0xff] %v546
        %555 = vst [vmem:[#allocation2 + $0xa0] sm:$0xff] %v547
        %556 = vst [vmem:[#allocation2 + $0xa8] sm:$0xff] %v548
        %557 = vst [vmem:[#allocation2 + $0xb0] sm:$0xff] %v549
        %558 = vst [vmem:[#allocation2 + $0xb8] sm:$0xff] %v550
        %559 = vrot.lane.b32.xlu0 %v388, 1
        %v560 = vpop.permute.xlu0 %559
        %561 = vrot.lane.b32.xlu0 %v390, 1
        %v562 = vpop.permute.xlu0 %561
        %563 = vrot.lane.b32.xlu0 %v392, 1
        %v564 = vpop.permute.xlu0 %563
        %565 = vrot.lane.b32.xlu0 %v394, 1
        %v566 = vpop.permute.xlu0 %565
        %567 = vrot.lane.b32.xlu0 %v389, 1
        %v568 = vpop.permute.xlu0 %567
        %569 = vrot.lane.b32.xlu0 %v391, 1
        %v570 = vpop.permute.xlu0 %569
        %571 = vrot.lane.b32.xlu0 %v393, 1
        %v572 = vpop.permute.xlu0 %571
        %573 = vrot.lane.b32.xlu0 %v395, 1
        %v574 = vpop.permute.xlu0 %573
        %vm575 = vcmp.lt.s32.totalorder %v413, 1
        %v576 = vsel %vm575, %v560, %v568
        %v577 = vsel %vm575, %v562, %v570
        %v578 = vsel %vm575, %v564, %v572
        %v579 = vsel %vm575, %v566, %v574
        %v580 = vsel %vm575, %v568, %v560
        %v581 = vsel %vm575, %v570, %v562
        %v582 = vsel %vm575, %v572, %v564
        %v583 = vsel %vm575, %v574, %v566
        %s584 = scalar_lea.vmem %s1, 6
        %v585 = vld [vmem:[%s584] sm:$0x3]
        %v587 = vlaneseq
        %v588 = vshrl.u32 %v587, 7
        %v589 = vsub.s32 0, %v588
        %v590 = vrot.slane %v585, %v589
        %v591 = vlaneseq
        %v592 = vshrl.u32 %v591, 7
        %v593 = vsub.s32 1, %v592
        %v594 = vrot.slane %v585, %v593
        %v597 = vmul.f32 %v580, %v590
        %v598 = vmul.f32 %v576, %v594
        %v599 = vmul.f32 %v581, %v590
        %v600 = vmul.f32 %v577, %v594
        %v601 = vmul.f32 %v582, %v590
        %v602 = vmul.f32 %v578, %v594
        %v603 = vmul.f32 %v583, %v590
        %v604 = vmul.f32 %v579, %v594
        %605 = vst [vmem:[#allocation2 + $0xc0] sm:$0xff] %v597
        %606 = vst [vmem:[#allocation2 + $0xc8] sm:$0xff] %v598
        %607 = vst [vmem:[#allocation2 + $0xd0] sm:$0xff] %v599
        %608 = vst [vmem:[#allocation2 + $0xd8] sm:$0xff] %v600
        %609 = vst [vmem:[#allocation2 + $0xe0] sm:$0xff] %v601
        %610 = vst [vmem:[#allocation2 + $0xe8] sm:$0xff] %v602
        %611 = vst [vmem:[#allocation2 + $0xf0] sm:$0xff] %v603
        %612 = vst [vmem:[#allocation2 + $0xf8] sm:$0xff] %v604
        %613 = vst [vmem:[#allocation2 + $0x100] sm:$0xff] %v388
        %614 = vst [vmem:[#allocation2 + $0x108] sm:$0xff] %v389
        %615 = vst [vmem:[#allocation2 + $0x110] sm:$0xff] %v390
        %616 = vst [vmem:[#allocation2 + $0x118] sm:$0xff] %v391
        %617 = vst [vmem:[#allocation2 + $0x120] sm:$0xff] %v392
        %618 = vst [vmem:[#allocation2 + $0x128] sm:$0xff] %v393
        %619 = vst [vmem:[#allocation2 + $0x130] sm:$0xff] %v394
        %620 = vst [vmem:[#allocation2 + $0x138] sm:$0xff] %v395
        %621 = vrot.lane.b32.xlu0 %v388, 127
        %v622 = vpop.permute.xlu0 %621
        %623 = vrot.lane.b32.xlu0 %v390, 127
        %v624 = vpop.permute.xlu0 %623
        %625 = vrot.lane.b32.xlu0 %v392, 127
        %v626 = vpop.permute.xlu0 %625
        %627 = vrot.lane.b32.xlu0 %v394, 127
        %v628 = vpop.permute.xlu0 %627
        %629 = vrot.lane.b32.xlu0 %v389, 127
        %v630 = vpop.permute.xlu0 %629
        %631 = vrot.lane.b32.xlu0 %v391, 127
        %v632 = vpop.permute.xlu0 %631
        %633 = vrot.lane.b32.xlu0 %v393, 127
        %v634 = vpop.permute.xlu0 %633
        %635 = vrot.lane.b32.xlu0 %v395, 127
        %v636 = vpop.permute.xlu0 %635
        %vm637 = vcmp.lt.s32.totalorder %v413, 127
        %v638 = vsel %vm637, %v622, %v630
        %v639 = vsel %vm637, %v624, %v632
        %v640 = vsel %vm637, %v626, %v634
        %v641 = vsel %vm637, %v628, %v636
        %v642 = vsel %vm637, %v630, %v622
        %v643 = vsel %vm637, %v632, %v624
        %v644 = vsel %vm637, %v634, %v626
        %v645 = vsel %vm637, %v636, %v628
        %s646 = scalar_lea.vmem %s1, 10
        %v647 = vld [vmem:[%s646] sm:$0x3]
        %v649 = vlaneseq
        %v650 = vshrl.u32 %v649, 7
        %v651 = vsub.s32 0, %v650
        %v652 = vrot.slane %v647, %v651
        %v653 = vlaneseq
        %v654 = vshrl.u32 %v653, 7
        %v655 = vsub.s32 1, %v654
        %v656 = vrot.slane %v647, %v655
        %v659 = vmul.f32 %v638, %v652
        %v660 = vmul.f32 %v642, %v656
        %v661 = vmul.f32 %v639, %v652
        %v662 = vmul.f32 %v643, %v656
        %v663 = vmul.f32 %v640, %v652
        %v664 = vmul.f32 %v644, %v656
        %v665 = vmul.f32 %v641, %v652
        %v666 = vmul.f32 %v645, %v656
        %667 = vst [vmem:[#allocation2 + $0x140] sm:$0xff] %v659
        %668 = vst [vmem:[#allocation2 + $0x148] sm:$0xff] %v660
        %669 = vst [vmem:[#allocation2 + $0x150] sm:$0xff] %v661
        %670 = vst [vmem:[#allocation2 + $0x158] sm:$0xff] %v662
        %671 = vst [vmem:[#allocation2 + $0x160] sm:$0xff] %v663
        %672 = vst [vmem:[#allocation2 + $0x168] sm:$0xff] %v664
        %673 = vst [vmem:[#allocation2 + $0x170] sm:$0xff] %v665
        %674 = vst [vmem:[#allocation2 + $0x178] sm:$0xff] %v666
        %675 = vrot.lane.b32.xlu0 %v388, 113
        %v676 = vpop.permute.xlu0 %675
        %677 = vrot.lane.b32.xlu0 %v390, 113
        %v678 = vpop.permute.xlu0 %677
        %679 = vrot.lane.b32.xlu0 %v392, 113
        %v680 = vpop.permute.xlu0 %679
        %681 = vrot.lane.b32.xlu0 %v394, 113
        %v682 = vpop.permute.xlu0 %681
        %683 = vrot.lane.b32.xlu0 %v389, 113
        %v684 = vpop.permute.xlu0 %683
        %685 = vrot.lane.b32.xlu0 %v391, 113
        %v686 = vpop.permute.xlu0 %685
        %687 = vrot.lane.b32.xlu0 %v393, 113
        %v688 = vpop.permute.xlu0 %687
        %689 = vrot.lane.b32.xlu0 %v395, 113
        %v690 = vpop.permute.xlu0 %689
        %vm691 = vcmp.lt.s32.totalorder %v413, 113
        %v692 = vsel %vm691, %v676, %v684
        %v693 = vsel %vm691, %v678, %v686
        %v694 = vsel %vm691, %v680, %v688
        %v695 = vsel %vm691, %v682, %v690
        %v696 = vsel %vm691, %v684, %v676
        %v697 = vsel %vm691, %v686, %v678
        %v698 = vsel %vm691, %v688, %v680
        %v699 = vsel %vm691, %v690, %v682
        %s700 = scalar_lea.vmem %s1, 12
        %v701 = vld [vmem:[%s700] sm:$0x3]
        %v703 = vlaneseq
        %v704 = vshrl.u32 %v703, 7
        %v705 = vsub.s32 0, %v704
        %v706 = vrot.slane %v701, %v705
        %v707 = vlaneseq
        %v708 = vshrl.u32 %v707, 7
        %v709 = vsub.s32 1, %v708
        %v710 = vrot.slane %v701, %v709
        %v713 = vmul.f32 %v692, %v706
        %v714 = vmul.f32 %v696, %v710
        %v715 = vmul.f32 %v693, %v706
        %v716 = vmul.f32 %v697, %v710
        %v717 = vmul.f32 %v694, %v706
        %v718 = vmul.f32 %v698, %v710
        %v719 = vmul.f32 %v695, %v706
        %v720 = vmul.f32 %v699, %v710
        %721 = vst [vmem:[#allocation2 + $0x180] sm:$0xff] %v713
        %722 = vst [vmem:[#allocation2 + $0x188] sm:$0xff] %v714
        %723 = vst [vmem:[#allocation2 + $0x190] sm:$0xff] %v715
        %724 = vst [vmem:[#allocation2 + $0x198] sm:$0xff] %v716
        %725 = vst [vmem:[#allocation2 + $0x1a0] sm:$0xff] %v717
        %726 = vst [vmem:[#allocation2 + $0x1a8] sm:$0xff] %v718
        %727 = vst [vmem:[#allocation2 + $0x1b0] sm:$0xff] %v719
        %728 = vst [vmem:[#allocation2 + $0x1b8] sm:$0xff] %v720
        %729 = vrot.lane.b32.xlu0 %v388, 112
        %v730 = vpop.permute.xlu0 %729
        %731 = vrot.lane.b32.xlu0 %v390, 112
        %v732 = vpop.permute.xlu0 %731
        %733 = vrot.lane.b32.xlu0 %v392, 112
        %v734 = vpop.permute.xlu0 %733
        %735 = vrot.lane.b32.xlu0 %v394, 112
        %v736 = vpop.permute.xlu0 %735
        %737 = vrot.lane.b32.xlu0 %v389, 112
        %v738 = vpop.permute.xlu0 %737
        %739 = vrot.lane.b32.xlu0 %v391, 112
        %v740 = vpop.permute.xlu0 %739
        %741 = vrot.lane.b32.xlu0 %v393, 112
        %v742 = vpop.permute.xlu0 %741
        %743 = vrot.lane.b32.xlu0 %v395, 112
        %v744 = vpop.permute.xlu0 %743
        %vm745 = vcmp.lt.s32.totalorder %v413, 112
        %v746 = vsel %vm745, %v730, %v738
        %v747 = vsel %vm745, %v732, %v740
        %v748 = vsel %vm745, %v734, %v742
        %v749 = vsel %vm745, %v736, %v744
        %v750 = vsel %vm745, %v738, %v730
        %v751 = vsel %vm745, %v740, %v732
        %v752 = vsel %vm745, %v742, %v734
        %v753 = vsel %vm745, %v744, %v736
        %s754 = scalar_lea.vmem %s1, 14
        %v755 = vld [vmem:[%s754] sm:$0x3]
        %v757 = vlaneseq
        %v758 = vshrl.u32 %v757, 7
        %v759 = vsub.s32 0, %v758
        %v760 = vrot.slane %v755, %v759
        %v761 = vlaneseq
        %v762 = vshrl.u32 %v761, 7
        %v763 = vsub.s32 1, %v762
        %v764 = vrot.slane %v755, %v763
        %v767 = vmul.f32 %v746, %v760
        %v768 = vmul.f32 %v750, %v764
        %v769 = vmul.f32 %v747, %v760
        %v770 = vmul.f32 %v751, %v764
        %v771 = vmul.f32 %v748, %v760
        %v772 = vmul.f32 %v752, %v764
        %v773 = vmul.f32 %v749, %v760
        %v774 = vmul.f32 %v753, %v764
        %775 = vst [vmem:[#allocation2 + $0x1c0] sm:$0xff] %v767
        %776 = vst [vmem:[#allocation2 + $0x1c8] sm:$0xff] %v768
        %777 = vst [vmem:[#allocation2 + $0x1d0] sm:$0xff] %v769
        %778 = vst [vmem:[#allocation2 + $0x1d8] sm:$0xff] %v770
        %779 = vst [vmem:[#allocation2 + $0x1e0] sm:$0xff] %v771
        %780 = vst [vmem:[#allocation2 + $0x1e8] sm:$0xff] %v772
        %781 = vst [vmem:[#allocation2 + $0x1f0] sm:$0xff] %v773
        %782 = vst [vmem:[#allocation2 + $0x1f8] sm:$0xff] %v774
        %783 = vrot.lane.b32.xlu0 %v388, 111
        %v784 = vpop.permute.xlu0 %783
        %785 = vrot.lane.b32.xlu0 %v390, 111
        %v786 = vpop.permute.xlu0 %785
        %787 = vrot.lane.b32.xlu0 %v392, 111
        %v788 = vpop.permute.xlu0 %787
        %789 = vrot.lane.b32.xlu0 %v394, 111
        %v790 = vpop.permute.xlu0 %789
        %791 = vrot.lane.b32.xlu0 %v389, 111
        %v792 = vpop.permute.xlu0 %791
        %793 = vrot.lane.b32.xlu0 %v391, 111
        %v794 = vpop.permute.xlu0 %793
        %795 = vrot.lane.b32.xlu0 %v393, 111
        %v796 = vpop.permute.xlu0 %795
        %797 = vrot.lane.b32.xlu0 %v395, 111
        %v798 = vpop.permute.xlu0 %797
        %vm799 = vcmp.lt.s32.totalorder %v413, 111
        %v800 = vsel %vm799, %v784, %v792
        %v801 = vsel %vm799, %v786, %v794
        %v802 = vsel %vm799, %v788, %v796
        %v803 = vsel %vm799, %v790, %v798
        %v804 = vsel %vm799, %v792, %v784
        %v805 = vsel %vm799, %v794, %v786
        %v806 = vsel %vm799, %v796, %v788
        %v807 = vsel %vm799, %v798, %v790
        %s808 = scalar_lea.vmem %s1, 16
        %v809 = vld [vmem:[%s808] sm:$0x3]
        %v811 = vlaneseq
        %v812 = vshrl.u32 %v811, 7
        %v813 = vsub.s32 0, %v812
        %v814 = vrot.slane %v809, %v813
        %v815 = vlaneseq
        %v816 = vshrl.u32 %v815, 7
        %v817 = vsub.s32 1, %v816
        %v818 = vrot.slane %v809, %v817
        %v821 = vmul.f32 %v800, %v814
        %v822 = vmul.f32 %v804, %v818
        %v823 = vmul.f32 %v801, %v814
        %v824 = vmul.f32 %v805, %v818
        %v825 = vmul.f32 %v802, %v814
        %v826 = vmul.f32 %v806, %v818
        %v827 = vmul.f32 %v803, %v814
        %v828 = vmul.f32 %v807, %v818
        %829 = vst [vmem:[#allocation2 + $0x200] sm:$0xff] %v821
        %830 = vst [vmem:[#allocation2 + $0x208] sm:$0xff] %v822
        %831 = vst [vmem:[#allocation2 + $0x210] sm:$0xff] %v823
        %832 = vst [vmem:[#allocation2 + $0x218] sm:$0xff] %v824
        %833 = vst [vmem:[#allocation2 + $0x220] sm:$0xff] %v825
        %834 = vst [vmem:[#allocation2 + $0x228] sm:$0xff] %v826
        %835 = vst [vmem:[#allocation2 + $0x230] sm:$0xff] %v827
        %836 = vst [vmem:[#allocation2 + $0x238] sm:$0xff] %v828
        %v837 = vld [vmem:[#allocation3] sm:$0xff]
        %v838 = vld [vmem:[#allocation3 + $0x8] sm:$0xff]
        %v839 = vld [vmem:[#allocation3 + $0x10] sm:$0xff]
        %v840 = vld [vmem:[#allocation3 + $0x18] sm:$0xff]
        %v841 = vld [vmem:[#allocation3 + $0x20] sm:$0xff]
        %v842 = vld [vmem:[#allocation3 + $0x28] sm:$0xff]
        %v843 = vld [vmem:[#allocation3 + $0x30] sm:$0xff]
        %v844 = vld [vmem:[#allocation3 + $0x38] sm:$0xff]
        %v845 = vld [vmem:[#allocation3 + $0x40] sm:$0xff]
        %v846 = vld [vmem:[#allocation3 + $0x48] sm:$0xff]
        %v847 = vld [vmem:[#allocation3 + $0x50] sm:$0xff]
        %v848 = vld [vmem:[#allocation3 + $0x58] sm:$0xff]
        %v849 = vld [vmem:[#allocation2] sm:$0xff]
        %v850 = vld [vmem:[#allocation2 + $0x8] sm:$0xff]
        %v851 = vld [vmem:[#allocation2 + $0x10] sm:$0xff]
        %v852 = vld [vmem:[#allocation2 + $0x18] sm:$0xff]
        %v853 = vld [vmem:[#allocation2 + $0x20] sm:$0xff]
        %v854 = vld [vmem:[#allocation2 + $0x28] sm:$0xff]
        %v855 = vld [vmem:[#allocation2 + $0x30] sm:$0xff]
        %v856 = vld [vmem:[#allocation2 + $0x38] sm:$0xff]
        %v857 = vld [vmem:[#allocation2 + $0x40] sm:$0xff]
        %v858 = vld [vmem:[#allocation2 + $0x48] sm:$0xff]
        %v859 = vld [vmem:[#allocation2 + $0x50] sm:$0xff]
        %v860 = vld [vmem:[#allocation2 + $0x58] sm:$0xff]
        %v861 = vld [vmem:[#allocation2 + $0x60] sm:$0xff]
        %v862 = vld [vmem:[#allocation2 + $0x68] sm:$0xff]
        %v863 = vld [vmem:[#allocation2 + $0x70] sm:$0xff]
        %v864 = vld [vmem:[#allocation2 + $0x78] sm:$0xff]
        %v865 = vld [vmem:[#allocation2 + $0x80] sm:$0xff]
        %v866 = vld [vmem:[#allocation2 + $0x88] sm:$0xff]
        %v867 = vld [vmem:[#allocation2 + $0x90] sm:$0xff]
        %v868 = vld [vmem:[#allocation2 + $0x98] sm:$0xff]
        %v869 = vld [vmem:[#allocation2 + $0xa0] sm:$0xff]
        %v870 = vld [vmem:[#allocation2 + $0xa8] sm:$0xff]
        %v871 = vld [vmem:[#allocation2 + $0xb0] sm:$0xff]
        %v872 = vld [vmem:[#allocation2 + $0xb8] sm:$0xff]
        %v873 = vld [vmem:[#allocation2 + $0xc0] sm:$0xff]
        %v874 = vld [vmem:[#allocation2 + $0xc8] sm:$0xff]
        %v875 = vld [vmem:[#allocation2 + $0xd0] sm:$0xff]
        %v876 = vld [vmem:[#allocation2 + $0xd8] sm:$0xff]
        %v877 = vld [vmem:[#allocation2 + $0xe0] sm:$0xff]
        %v878 = vld [vmem:[#allocation2 + $0xe8] sm:$0xff]
        %v879 = vld [vmem:[#allocation2 + $0xf0] sm:$0xff]
        %v880 = vld [vmem:[#allocation2 + $0xf8] sm:$0xff]
        %v881 = vld [vmem:[#allocation2 + $0x100] sm:$0xff]
        %v882 = vld [vmem:[#allocation2 + $0x108] sm:$0xff]
        %v883 = vld [vmem:[#allocation2 + $0x110] sm:$0xff]
        %v884 = vld [vmem:[#allocation2 + $0x118] sm:$0xff]
        %v885 = vld [vmem:[#allocation2 + $0x120] sm:$0xff]
        %v886 = vld [vmem:[#allocation2 + $0x128] sm:$0xff]
        %v887 = vld [vmem:[#allocation2 + $0x130] sm:$0xff]
        %v888 = vld [vmem:[#allocation2 + $0x138] sm:$0xff]
        %v889 = vld [vmem:[#allocation2 + $0x140] sm:$0xff]
        %v890 = vld [vmem:[#allocation2 + $0x148] sm:$0xff]
        %v891 = vld [vmem:[#allocation2 + $0x150] sm:$0xff]
        %v892 = vld [vmem:[#allocation2 + $0x158] sm:$0xff]
        %v893 = vld [vmem:[#allocation2 + $0x160] sm:$0xff]
        %v894 = vld [vmem:[#allocation2 + $0x168] sm:$0xff]
        %v895 = vld [vmem:[#allocation2 + $0x170] sm:$0xff]
        %v896 = vld [vmem:[#allocation2 + $0x178] sm:$0xff]
        %v897 = vld [vmem:[#allocation2 + $0x180] sm:$0xff]
        %v898 = vld [vmem:[#allocation2 + $0x188] sm:$0xff]
        %v899 = vld [vmem:[#allocation2 + $0x190] sm:$0xff]
        %v900 = vld [vmem:[#allocation2 + $0x198] sm:$0xff]
        %v901 = vld [vmem:[#allocation2 + $0x1a0] sm:$0xff]
        %v902 = vld [vmem:[#allocation2 + $0x1a8] sm:$0xff]
        %v903 = vld [vmem:[#allocation2 + $0x1b0] sm:$0xff]
        %v904 = vld [vmem:[#allocation2 + $0x1b8] sm:$0xff]
        %v905 = vld [vmem:[#allocation2 + $0x1c0] sm:$0xff]
        %v906 = vld [vmem:[#allocation2 + $0x1c8] sm:$0xff]
        %v907 = vld [vmem:[#allocation2 + $0x1d0] sm:$0xff]
        %v908 = vld [vmem:[#allocation2 + $0x1d8] sm:$0xff]
        %v909 = vld [vmem:[#allocation2 + $0x1e0] sm:$0xff]
        %v910 = vld [vmem:[#allocation2 + $0x1e8] sm:$0xff]
        %v911 = vld [vmem:[#allocation2 + $0x1f0] sm:$0xff]
        %v912 = vld [vmem:[#allocation2 + $0x1f8] sm:$0xff]
        %v913 = vld [vmem:[#allocation2 + $0x200] sm:$0xff]
        %v914 = vld [vmem:[#allocation2 + $0x208] sm:$0xff]
        %v915 = vld [vmem:[#allocation2 + $0x210] sm:$0xff]
        %v916 = vld [vmem:[#allocation2 + $0x218] sm:$0xff]
        %v917 = vld [vmem:[#allocation2 + $0x220] sm:$0xff]
        %v918 = vld [vmem:[#allocation2 + $0x228] sm:$0xff]
        %v919 = vld [vmem:[#allocation2 + $0x230] sm:$0xff]
        %v920 = vld [vmem:[#allocation2 + $0x238] sm:$0xff]
        %v921 = vld [vmem:[%s3] sm:$0xff]
        %v922 = vld [vmem:[%s3 + $0x8] sm:$0xff]
        %v923 = vld [vmem:[%s3 + $0x10] sm:$0xff]
        %v924 = vld [vmem:[%s3 + $0x18] sm:$0xff]
        %926 = vset.pattern.permute.xlu0 0
        %927 = vperm.xlu0 %926, %v921
        %v928 = vpop.permute.xlu0 %927
        %931 = vset.pattern.permute.xlu0 0
        %932 = vperm.xlu0 %931, %v922
        %v933 = vpop.permute.xlu0 %932
        %936 = vset.pattern.permute.xlu0 0
        %937 = vperm.xlu0 %936, %v923
        %v938 = vpop.permute.xlu0 %937
        %941 = vset.pattern.permute.xlu0 0
        %942 = vperm.xlu0 %941, %v924
        %v943 = vpop.permute.xlu0 %942
        %vm945 = vcmask 261120
        %v947 = vsel %vm945, %v839, 0
        %v950 = vsel %vm945, %v842, 0
        %v953 = vsel %vm945, %v845, 0
        %v956 = vsel %vm945, %v848, 0
        %958 = vmatprep.subr.mxu0 %v850
        %959 = vmatpush1.msra.mxu0 %v849
        %960 = vmatprep.subr.mxu0 %v852
        %961 = vmatpush1.msra.mxu0 %v851
        %962 = vmatprep.subr.mxu0 %v854
        %963 = vmatpush1.msra.mxu0 %v853
        %964 = vmatprep.subr.mxu0 %v856
        %965 = vmatpush1.msra.mxu0 %v855
        %966 = vmatprep.subr.mxu0 %v858
        %967 = vmatpush1.msra.mxu0 %v857
        %968 = vmatprep.subr.mxu0 %v860
        %969 = vmatpush1.msra.mxu0 %v859
        %970 = vmatprep.subr.mxu0 %v862
        %971 = vmatpush1.msra.mxu0 %v861
        %972 = vmatprep.subr.mxu0 %v864
        %973 = vmatpush1.msra.mxu0 %v863
        %974 = vmatprep.subr.mxu0 %v866
        %975 = vmatpush1.msra.mxu0 %v865
        %976 = vmatprep.subr.mxu0 %v868
        %977 = vmatpush1.msra.mxu0 %v867
        %978 = vmatprep.subr.mxu0 %v870
        %979 = vmatpush1.msra.mxu0 %v869
        %980 = vmatprep.subr.mxu0 %v872
        %981 = vmatpush1.msra.mxu0 %v871
        %982 = vmatprep.subr.mxu0 %v874
        %983 = vmatpush1.msra.mxu0 %v873
        %984 = vmatprep.subr.mxu0 %v876
        %985 = vmatpush1.msra.mxu0 %v875
        %986 = vmatprep.subr.mxu0 %v878
        %987 = vmatpush1.msra.mxu0 %v877
        %988 = vmatprep.subr.mxu0 %v880
        %989 = vmatpush1.msra.mxu0 %v879
        %990 = vmatprep.subr.mxu0 %v882
        %991 = vmatpush1.msra.mxu0 %v881
        %992 = vmatprep.subr.mxu0 %v884
        %993 = vmatpush1.msra.mxu0 %v883
        %994 = vmatprep.subr.mxu0 %v886
        %995 = vmatpush1.msra.mxu0 %v885
        %996 = vmatprep.subr.mxu0 %v888
        %997 = vmatpush1.msra.mxu0 %v887
        %998 = vmatprep.subr.mxu0 %v890
        %999 = vmatpush1.msra.mxu0 %v889
        %1000 = vmatprep.subr.mxu0 %v892
        %1001 = vmatpush1.msra.mxu0 %v891
        %1002 = vmatprep.subr.mxu0 %v894
        %1003 = vmatpush1.msra.mxu0 %v893
        %1004 = vmatprep.subr.mxu0 %v896
        %1005 = vmatpush1.msra.mxu0 %v895
        %1006 = vmatprep.subr.mxu0 %v898
        %1007 = vmatpush1.msra.mxu0 %v897
        %1008 = vmatprep.subr.mxu0 %v900
        %1009 = vmatpush1.msra.mxu0 %v899
        %1010 = vmatprep.subr.mxu0 %v902
        %1011 = vmatpush1.msra.mxu0 %v901
        %1012 = vmatprep.subr.mxu0 %v904
        %1013 = vmatpush1.msra.mxu0 %v903
        %1014 = vmatprep.subr.mxu0 %v906
        %1015 = vmatpush1.msra.mxu0 %v905
        %1016 = vmatprep.subr.mxu0 %v908
        %1017 = vmatpush1.msra.mxu0 %v907
        %1018 = vmatprep.subr.mxu0 %v910
        %1019 = vmatpush1.msra.mxu0 %v909
        %1020 = vmatprep.subr.mxu0 %v912
        %1021 = vmatpush1.msra.mxu0 %v911
        %1022 = vmatprep.mubr.f32.mxu0 %v838
        %1023 = vmatmul.mubr.f32.gmra.mrb[0].mxu0 %v837
        %v1024 = vpop.f32.mrb[0].mxu0
        %v1025 = vadd.f32 %v928, %v1024
        %v1026 = vpop.f32.mrb[0].mxu0
        %v1027 = vadd.f32 %v928, %v1026
        %1028 = vmatprep.mubr.f32.mxu0 %v841
        %1029 = vmatmul.mubr.f32.gmra.mrb[0].mxu0 %v840
        %v1030 = vpop.f32.mrb[0].mxu0
        %v1031 = vadd.f32 %v933, %v1030
        %v1032 = vpop.f32.mrb[0].mxu0
        %v1033 = vadd.f32 %v933, %v1032
        %1034 = vmatprep.mubr.f32.mxu0 %v844
        %1035 = vmatmul.mubr.f32.gmra.mrb[0].mxu0 %v843
        %v1036 = vpop.f32.mrb[0].mxu0
        %v1037 = vadd.f32 %v938, %v1036
        %v1038 = vpop.f32.mrb[0].mxu0
        %v1039 = vadd.f32 %v938, %v1038
        %1040 = vmatprep.mubr.f32.mxu0 %v847
        %1041 = vmatmul.mubr.f32.gmra.mrb[0].mxu0 %v846
        %v1042 = vpop.f32.mrb[0].mxu0
        %v1043 = vadd.f32 %v943, %v1042
        %v1044 = vpop.f32.mrb[0].mxu0
        %v1045 = vadd.f32 %v943, %v1044
        %1046 = vdwg.mxu0
        %1047 = vmatprep.subr.mxu0 %v914
        %1048 = vmatpush1.msra.mxu0 %v913
        %1049 = vmatprep.subr.mxu0 %v916
        %1050 = vmatpush1.msra.mxu0 %v915
        %1051 = vmatprep.subr.mxu0 %v918
        %1052 = vmatpush1.msra.mxu0 %v917
        %1053 = vmatprep.subr.mxu0 %v920
        %1054 = vmatpush1.msra.mxu0 %v919
        %1055 = vmatprep.subr.mxu0 0.0
        %1056 = vmatpush1.msra.mxu0 0.0
        %1057 = vmatprep.subr.mxu0 0.0
        %1058 = vmatpush1.msra.mxu0 0.0
        %1059 = vmatprep.subr.mxu0 0.0
        %1060 = vmatpush1.msra.mxu0 0.0
        %1061 = vmatprep.subr.mxu0 0.0
        %1062 = vmatpush1.msra.mxu0 0.0
        %1063 = vmatprep.subr.mxu0 0.0
        %1064 = vmatpush1.msra.mxu0 0.0
        %1065 = vmatprep.subr.mxu0 0.0
        %1066 = vmatpush1.msra.mxu0 0.0
        %1067 = vmatprep.subr.mxu0 0.0
        %1068 = vmatpush1.msra.mxu0 0.0
        %1069 = vmatprep.subr.mxu0 0.0
        %1070 = vmatpush1.msra.mxu0 0.0
        %1071 = vmatprep.subr.mxu0 0.0
        %1072 = vmatpush1.msra.mxu0 0.0
        %1073 = vmatprep.subr.mxu0 0.0
        %1074 = vmatpush1.msra.mxu0 0.0
        %1075 = vmatprep.subr.mxu0 0.0
        %1076 = vmatpush1.msra.mxu0 0.0
        %1077 = vmatprep.subr.mxu0 0.0
        %1078 = vmatpush1.msra.mxu0 0.0
        %1079 = vmatprep.subr.mxu0 0.0
        %1080 = vmatpush1.msra.mxu0 0.0
        %1081 = vmatprep.subr.mxu0 0.0
        %1082 = vmatpush1.msra.mxu0 0.0
        %1083 = vmatprep.subr.mxu0 0.0
        %1084 = vmatpush1.msra.mxu0 0.0
        %1085 = vmatprep.subr.mxu0 0.0
        %1086 = vmatpush1.msra.mxu0 0.0
        %1087 = vmatprep.subr.mxu0 0.0
        %1088 = vmatpush1.msra.mxu0 0.0
        %1089 = vmatprep.subr.mxu0 0.0
        %1090 = vmatpush1.msra.mxu0 0.0
        %1091 = vmatprep.subr.mxu0 0.0
        %1092 = vmatpush1.msra.mxu0 0.0
        %1093 = vmatprep.subr.mxu0 0.0
        %1094 = vmatpush1.msra.mxu0 0.0
        %1095 = vmatprep.subr.mxu0 0.0
        %1096 = vmatpush1.msra.mxu0 0.0
        %1097 = vmatprep.subr.mxu0 0.0
        %1098 = vmatpush1.msra.mxu0 0.0
        %1099 = vmatprep.subr.mxu0 0.0
        %1100 = vmatpush1.msra.mxu0 0.0
        %1101 = vmatprep.subr.mxu0 0.0
        %1102 = vmatpush1.msra.mxu0 0.0
        %1103 = vmatprep.subr.mxu0 0.0
        %1104 = vmatpush1.msra.mxu0 0.0
        %1105 = vmatprep.subr.mxu0 0.0
        %1106 = vmatpush1.msra.mxu0 0.0
        %1107 = vmatprep.subr.mxu0 0.0
        %1108 = vmatpush1.msra.mxu0 0.0
        %1109 = vmatprep.subr.mxu0 0.0
        %1110 = vmatpush1.msra.mxu0 0.0
        %1111 = vmatprep.mubr.f32.mxu0 0.0
        %1112 = vmatmul.mubr.f32.gmra.mrb[0].mxu0 %v947
        %v1113 = vpop.f32.mrb[0].mxu0
        %v1114 = vadd.f32 %v1025, %v1113
        %v1115 = vpop.f32.mrb[0].mxu0
        %v1116 = vadd.f32 %v1027, %v1115
        %1117 = vmatprep.mubr.f32.mxu0 0.0
        %1118 = vmatmul.mubr.f32.gmra.mrb[0].mxu0 %v950
        %v1119 = vpop.f32.mrb[0].mxu0
        %v1120 = vadd.f32 %v1031, %v1119
        %v1121 = vpop.f32.mrb[0].mxu0
        %v1122 = vadd.f32 %v1033, %v1121
        %1123 = vmatprep.mubr.f32.mxu0 0.0
        %1124 = vmatmul.mubr.f32.gmra.mrb[0].mxu0 %v953
        %v1125 = vpop.f32.mrb[0].mxu0
        %v1126 = vadd.f32 %v1037, %v1125
        %v1127 = vpop.f32.mrb[0].mxu0
        %v1128 = vadd.f32 %v1039, %v1127
        %1129 = vmatprep.mubr.f32.mxu0 0.0
        %1130 = vmatmul.mubr.f32.gmra.mrb[0].mxu0 %v956
        %v1131 = vpop.f32.mrb[0].mxu0
        %v1132 = vadd.f32 %v1043, %v1131
        %v1133 = vpop.f32.mrb[0].mxu0
        %v1134 = vadd.f32 %v1045, %v1133
        %1135 = vdwg.mxu0
        %v1136 = vmax.f32 %v1114, 0.0
        %v1137 = vmax.f32 %v1116, 0.0
        %v1138 = vmax.f32 %v1120, 0.0
        %v1139 = vmax.f32 %v1122, 0.0
        %v1140 = vmax.f32 %v1126, 0.0
        %v1141 = vmax.f32 %v1128, 0.0
        %v1142 = vmax.f32 %v1132, 0.0
        %v1143 = vmax.f32 %v1134, 0.0
        %1144 = vrot.lane.b32.xlu0 %v1136, 17
        %v1145 = vpop.permute.xlu0 %1144
        %1146 = vrot.lane.b32.xlu0 %v1138, 17
        %v1147 = vpop.permute.xlu0 %1146
        %1148 = vrot.lane.b32.xlu0 %v1140, 17
        %v1149 = vpop.permute.xlu0 %1148
        %1150 = vrot.lane.b32.xlu0 %v1142, 17
        %v1151 = vpop.permute.xlu0 %1150
        %1152 = vrot.lane.b32.xlu0 %v1137, 17
        %v1153 = vpop.permute.xlu0 %1152
        %1154 = vrot.lane.b32.xlu0 %v1139, 17
        %v1155 = vpop.permute.xlu0 %1154
        %1156 = vrot.lane.b32.xlu0 %v1141, 17
        %v1157 = vpop.permute.xlu0 %1156
        %1158 = vrot.lane.b32.xlu0 %v1143, 17
        %v1159 = vpop.permute.xlu0 %1158
        %v1160 = vsel %vm414, %v1145, %v1153
        %v1161 = vsel %vm414, %v1147, %v1155
        %v1162 = vsel %vm414, %v1149, %v1157
        %v1163 = vsel %vm414, %v1151, %v1159
        %v1164 = vsel %vm414, %v1153, %v1145
        %v1165 = vsel %vm414, %v1155, %v1147
        %v1166 = vsel %vm414, %v1157, %v1149
        %v1167 = vsel %vm414, %v1159, %v1151
        %v1168 = vld [vmem:[%s1] sm:$0x3]
        %v1170 = vlaneseq
        %v1171 = vshrl.u32 %v1170, 7
        %v1172 = vsub.s32 0, %v1171
        %v1173 = vrot.slane %v1168, %v1172
        %v1174 = vlaneseq
        %v1175 = vshrl.u32 %v1174, 7
        %v1176 = vsub.s32 1, %v1175
        %v1177 = vrot.slane %v1168, %v1176
        %v1180 = vmul.f32 %v1164, %v1173
        %v1181 = vmul.f32 %v1160, %v1177
        %v1182 = vmul.f32 %v1165, %v1173
        %v1183 = vmul.f32 %v1161, %v1177
        %v1184 = vmul.f32 %v1166, %v1173
        %v1185 = vmul.f32 %v1162, %v1177
        %v1186 = vmul.f32 %v1167, %v1173
        %v1187 = vmul.f32 %v1163, %v1177
        %1188 = vst [vmem:[#allocation2] sm:$0xff] %v1180
        %1189 = vst [vmem:[#allocation2 + $0x8] sm:$0xff] %v1181
        %1190 = vst [vmem:[#allocation2 + $0x10] sm:$0xff] %v1182
        %1191 = vst [vmem:[#allocation2 + $0x18] sm:$0xff] %v1183
        %1192 = vst [vmem:[#allocation2 + $0x20] sm:$0xff] %v1184
        %1193 = vst [vmem:[#allocation2 + $0x28] sm:$0xff] %v1185
        %1194 = vst [vmem:[#allocation2 + $0x30] sm:$0xff] %v1186
        %1195 = vst [vmem:[#allocation2 + $0x38] sm:$0xff] %v1187
        %1196 = vrot.lane.b32.xlu0 %v1136, 16
        %v1197 = vpop.permute.xlu0 %1196
        %1198 = vrot.lane.b32.xlu0 %v1138, 16
        %v1199 = vpop.permute.xlu0 %1198
        %1200 = vrot.lane.b32.xlu0 %v1140, 16
        %v1201 = vpop.permute.xlu0 %1200
        %1202 = vrot.lane.b32.xlu0 %v1142, 16
        %v1203 = vpop.permute.xlu0 %1202
        %1204 = vrot.lane.b32.xlu0 %v1137, 16
        %v1205 = vpop.permute.xlu0 %1204
        %1206 = vrot.lane.b32.xlu0 %v1139, 16
        %v1207 = vpop.permute.xlu0 %1206
        %1208 = vrot.lane.b32.xlu0 %v1141, 16
        %v1209 = vpop.permute.xlu0 %1208
        %1210 = vrot.lane.b32.xlu0 %v1143, 16
        %v1211 = vpop.permute.xlu0 %1210
        %v1212 = vsel %vm467, %v1197, %v1205
        %v1213 = vsel %vm467, %v1199, %v1207
        %v1214 = vsel %vm467, %v1201, %v1209
        %v1215 = vsel %vm467, %v1203, %v1211
        %v1216 = vsel %vm467, %v1205, %v1197
        %v1217 = vsel %vm467, %v1207, %v1199
        %v1218 = vsel %vm467, %v1209, %v1201
        %v1219 = vsel %vm467, %v1211, %v1203
        %v1220 = vld [vmem:[%s476] sm:$0x3]
        %v1222 = vlaneseq
        %v1223 = vshrl.u32 %v1222, 7
        %v1224 = vsub.s32 0, %v1223
        %v1225 = vrot.slane %v1220, %v1224
        %v1226 = vlaneseq
        %v1227 = vshrl.u32 %v1226, 7
        %v1228 = vsub.s32 1, %v1227
        %v1229 = vrot.slane %v1220, %v1228
        %v1232 = vmul.f32 %v1216, %v1225
        %v1233 = vmul.f32 %v1212, %v1229
        %v1234 = vmul.f32 %v1217, %v1225
        %v1235 = vmul.f32 %v1213, %v1229
        %v1236 = vmul.f32 %v1218, %v1225
        %v1237 = vmul.f32 %v1214, %v1229
        %v1238 = vmul.f32 %v1219, %v1225
        %v1239 = vmul.f32 %v1215, %v1229
        %1240 = vst [vmem:[#allocation2 + $0x40] sm:$0xff] %v1232
        %1241 = vst [vmem:[#allocation2 + $0x48] sm:$0xff] %v1233
        %1242 = vst [vmem:[#allocation2 + $0x50] sm:$0xff] %v1234
        %1243 = vst [vmem:[#allocation2 + $0x58] sm:$0xff] %v1235
        %1244 = vst [vmem:[#allocation2 + $0x60] sm:$0xff] %v1236
        %1245 = vst [vmem:[#allocation2 + $0x68] sm:$0xff] %v1237
        %1246 = vst [vmem:[#allocation2 + $0x70] sm:$0xff] %v1238
        %1247 = vst [vmem:[#allocation2 + $0x78] sm:$0xff] %v1239
        %1248 = vrot.lane.b32.xlu0 %v1136, 15
        %v1249 = vpop.permute.xlu0 %1248
        %1250 = vrot.lane.b32.xlu0 %v1138, 15
        %v1251 = vpop.permute.xlu0 %1250
        %1252 = vrot.lane.b32.xlu0 %v1140, 15
        %v1253 = vpop.permute.xlu0 %1252
        %1254 = vrot.lane.b32.xlu0 %v1142, 15
        %v1255 = vpop.permute.xlu0 %1254
        %1256 = vrot.lane.b32.xlu0 %v1137, 15
        %v1257 = vpop.permute.xlu0 %1256
        %1258 = vrot.lane.b32.xlu0 %v1139, 15
        %v1259 = vpop.permute.xlu0 %1258
        %1260 = vrot.lane.b32.xlu0 %v1141, 15
        %v1261 = vpop.permute.xlu0 %1260
        %1262 = vrot.lane.b32.xlu0 %v1143, 15
        %v1263 = vpop.permute.xlu0 %1262
        %v1264 = vsel %vm521, %v1249, %v1257
        %v1265 = vsel %vm521, %v1251, %v1259
        %v1266 = vsel %vm521, %v1253, %v1261
        %v1267 = vsel %vm521, %v1255, %v1263
        %v1268 = vsel %vm521, %v1257, %v1249
        %v1269 = vsel %vm521, %v1259, %v1251
        %v1270 = vsel %vm521, %v1261, %v1253
        %v1271 = vsel %vm521, %v1263, %v1255
        %v1272 = vld [vmem:[%s530] sm:$0x3]
        %v1274 = vlaneseq
        %v1275 = vshrl.u32 %v1274, 7
        %v1276 = vsub.s32 0, %v1275
        %v1277 = vrot.slane %v1272, %v1276
        %v1278 = vlaneseq
        %v1279 = vshrl.u32 %v1278, 7
        %v1280 = vsub.s32 1, %v1279
        %v1281 = vrot.slane %v1272, %v1280
        %v1284 = vmul.f32 %v1268, %v1277
        %v1285 = vmul.f32 %v1264, %v1281
        %v1286 = vmul.f32 %v1269, %v1277
        %v1287 = vmul.f32 %v1265, %v1281
        %v1288 = vmul.f32 %v1270, %v1277
        %v1289 = vmul.f32 %v1266, %v1281
        %v1290 = vmul.f32 %v1271, %v1277
        %v1291 = vmul.f32 %v1267, %v1281
        %1292 = vst [vmem:[#allocation2 + $0x80] sm:$0xff] %v1284
        %1293 = vst [vmem:[#allocation2 + $0x88] sm:$0xff] %v1285
        %1294 = vst [vmem:[#allocation2 + $0x90] sm:$0xff] %v1286
        %1295 = vst [vmem:[#allocation2 + $0x98] sm:$0xff] %v1287
        %1296 = vst [vmem:[#allocation2 + $0xa0] sm:$0xff] %v1288
        %1297 = vst [vmem:[#allocation2 + $0xa8] sm:$0xff] %v1289
        %1298 = vst [vmem:[#allocation2 + $0xb0] sm:$0xff] %v1290
        %1299 = vst [vmem:[#allocation2 + $0xb8] sm:$0xff] %v1291
        %1300 = vrot.lane.b32.xlu0 %v1136, 1
        %v1301 = vpop.permute.xlu0 %1300
        %1302 = vrot.lane.b32.xlu0 %v1138, 1
        %v1303 = vpop.permute.xlu0 %1302
        %1304 = vrot.lane.b32.xlu0 %v1140, 1
        %v1305 = vpop.permute.xlu0 %1304
        %1306 = vrot.lane.b32.xlu0 %v1142, 1
        %v1307 = vpop.permute.xlu0 %1306
        %1308 = vrot.lane.b32.xlu0 %v1137, 1
        %v1309 = vpop.permute.xlu0 %1308
        %1310 = vrot.lane.b32.xlu0 %v1139, 1
        %v1311 = vpop.permute.xlu0 %1310
        %1312 = vrot.lane.b32.xlu0 %v1141, 1
        %v1313 = vpop.permute.xlu0 %1312
        %1314 = vrot.lane.b32.xlu0 %v1143, 1
        %v1315 = vpop.permute.xlu0 %1314
        %v1316 = vsel %vm575, %v1301, %v1309
        %v1317 = vsel %vm575, %v1303, %v1311
        %v1318 = vsel %vm575, %v1305, %v1313
        %v1319 = vsel %vm575, %v1307, %v1315
        %v1320 = vsel %vm575, %v1309, %v1301
        %v1321 = vsel %vm575, %v1311, %v1303
        %v1322 = vsel %vm575, %v1313, %v1305
        %v1323 = vsel %vm575, %v1315, %v1307
        %v1324 = vld [vmem:[%s584] sm:$0x3]
        %v1326 = vlaneseq
        %v1327 = vshrl.u32 %v1326, 7
        %v1328 = vsub.s32 0, %v1327
        %v1329 = vrot.slane %v1324, %v1328
        %v1330 = vlaneseq
        %v1331 = vshrl.u32 %v1330, 7
        %v1332 = vsub.s32 1, %v1331
        %v1333 = vrot.slane %v1324, %v1332
        %v1336 = vmul.f32 %v1320, %v1329
        %v1337 = vmul.f32 %v1316, %v1333
        %v1338 = vmul.f32 %v1321, %v1329
        %v1339 = vmul.f32 %v1317, %v1333
        %v1340 = vmul.f32 %v1322, %v1329
        %v1341 = vmul.f32 %v1318, %v1333
        %v1342 = vmul.f32 %v1323, %v1329
        %v1343 = vmul.f32 %v1319, %v1333
        %1344 = vst [vmem:[#allocation2 + $0xc0] sm:$0xff] %v1336
        %1345 = vst [vmem:[#allocation2 + $0xc8] sm:$0xff] %v1337
        %1346 = vst [vmem:[#allocation2 + $0xd0] sm:$0xff] %v1338
        %1347 = vst [vmem:[#allocation2 + $0xd8] sm:$0xff] %v1339
        %1348 = vst [vmem:[#allocation2 + $0xe0] sm:$0xff] %v1340
        %1349 = vst [vmem:[#allocation2 + $0xe8] sm:$0xff] %v1341
        %1350 = vst [vmem:[#allocation2 + $0xf0] sm:$0xff] %v1342
        %1351 = vst [vmem:[#allocation2 + $0xf8] sm:$0xff] %v1343
        %1352 = vst [vmem:[#allocation2 + $0x100] sm:$0xff] %v1136
        %1353 = vst [vmem:[#allocation2 + $0x108] sm:$0xff] %v1137
        %1354 = vst [vmem:[#allocation2 + $0x110] sm:$0xff] %v1138
        %1355 = vst [vmem:[#allocation2 + $0x118] sm:$0xff] %v1139
        %1356 = vst [vmem:[#allocation2 + $0x120] sm:$0xff] %v1140
        %1357 = vst [vmem:[#allocation2 + $0x128] sm:$0xff] %v1141
        %1358 = vst [vmem:[#allocation2 + $0x130] sm:$0xff] %v1142
        %1359 = vst [vmem:[#allocation2 + $0x138] sm:$0xff] %v1143
        %1360 = vrot.lane.b32.xlu0 %v1136, 127
        %v1361 = vpop.permute.xlu0 %1360
        %1362 = vrot.lane.b32.xlu0 %v1138, 127
        %v1363 = vpop.permute.xlu0 %1362
        %1364 = vrot.lane.b32.xlu0 %v1140, 127
        %v1365 = vpop.permute.xlu0 %1364
        %1366 = vrot.lane.b32.xlu0 %v1142, 127
        %v1367 = vpop.permute.xlu0 %1366
        %1368 = vrot.lane.b32.xlu0 %v1137, 127
        %v1369 = vpop.permute.xlu0 %1368
        %1370 = vrot.lane.b32.xlu0 %v1139, 127
        %v1371 = vpop.permute.xlu0 %1370
        %1372 = vrot.lane.b32.xlu0 %v1141, 127
        %v1373 = vpop.permute.xlu0 %1372
        %1374 = vrot.lane.b32.xlu0 %v1143, 127
        %v1375 = vpop.permute.xlu0 %1374
        %v1376 = vsel %vm637, %v1361, %v1369
        %v1377 = vsel %vm637, %v1363, %v1371
        %v1378 = vsel %vm637, %v1365, %v1373
        %v1379 = vsel %vm637, %v1367, %v1375
        %v1380 = vsel %vm637, %v1369, %v1361
        %v1381 = vsel %vm637, %v1371, %v1363
        %v1382 = vsel %vm637, %v1373, %v1365
        %v1383 = vsel %vm637, %v1375, %v1367
        %v1384 = vld [vmem:[%s646] sm:$0x3]
        %v1386 = vlaneseq
        %v1387 = vshrl.u32 %v1386, 7
        %v1388 = vsub.s32 0, %v1387
        %v1389 = vrot.slane %v1384, %v1388
        %v1390 = vlaneseq
        %v1391 = vshrl.u32 %v1390, 7
        %v1392 = vsub.s32 1, %v1391
        %v1393 = vrot.slane %v1384, %v1392
        %v1396 = vmul.f32 %v1376, %v1389
        %v1397 = vmul.f32 %v1380, %v1393
        %v1398 = vmul.f32 %v1377, %v1389
        %v1399 = vmul.f32 %v1381, %v1393
        %v1400 = vmul.f32 %v1378, %v1389
        %v1401 = vmul.f32 %v1382, %v1393
        %v1402 = vmul.f32 %v1379, %v1389
        %v1403 = vmul.f32 %v1383, %v1393
        %1404 = vst [vmem:[#allocation2 + $0x140] sm:$0xff] %v1396
        %1405 = vst [vmem:[#allocation2 + $0x148] sm:$0xff] %v1397
        %1406 = vst [vmem:[#allocation2 + $0x150] sm:$0xff] %v1398
        %1407 = vst [vmem:[#allocation2 + $0x158] sm:$0xff] %v1399
        %1408 = vst [vmem:[#allocation2 + $0x160] sm:$0xff] %v1400
        %1409 = vst [vmem:[#allocation2 + $0x168] sm:$0xff] %v1401
        %1410 = vst [vmem:[#allocation2 + $0x170] sm:$0xff] %v1402
        %1411 = vst [vmem:[#allocation2 + $0x178] sm:$0xff] %v1403
        %1412 = vrot.lane.b32.xlu0 %v1136, 113
        %v1413 = vpop.permute.xlu0 %1412
        %1414 = vrot.lane.b32.xlu0 %v1138, 113
        %v1415 = vpop.permute.xlu0 %1414
        %1416 = vrot.lane.b32.xlu0 %v1140, 113
        %v1417 = vpop.permute.xlu0 %1416
        %1418 = vrot.lane.b32.xlu0 %v1142, 113
        %v1419 = vpop.permute.xlu0 %1418
        %1420 = vrot.lane.b32.xlu0 %v1137, 113
        %v1421 = vpop.permute.xlu0 %1420
        %1422 = vrot.lane.b32.xlu0 %v1139, 113
        %v1423 = vpop.permute.xlu0 %1422
        %1424 = vrot.lane.b32.xlu0 %v1141, 113
        %v1425 = vpop.permute.xlu0 %1424
        %1426 = vrot.lane.b32.xlu0 %v1143, 113
        %v1427 = vpop.permute.xlu0 %1426
        %v1428 = vsel %vm691, %v1413, %v1421
        %v1429 = vsel %vm691, %v1415, %v1423
        %v1430 = vsel %vm691, %v1417, %v1425
        %v1431 = vsel %vm691, %v1419, %v1427
        %v1432 = vsel %vm691, %v1421, %v1413
        %v1433 = vsel %vm691, %v1423, %v1415
        %v1434 = vsel %vm691, %v1425, %v1417
        %v1435 = vsel %vm691, %v1427, %v1419
        %v1436 = vld [vmem:[%s700] sm:$0x3]
        %v1438 = vlaneseq
        %v1439 = vshrl.u32 %v1438, 7
        %v1440 = vsub.s32 0, %v1439
        %v1441 = vrot.slane %v1436, %v1440
        %v1442 = vlaneseq
        %v1443 = vshrl.u32 %v1442, 7
        %v1444 = vsub.s32 1, %v1443
        %v1445 = vrot.slane %v1436, %v1444
        %v1448 = vmul.f32 %v1428, %v1441
        %v1449 = vmul.f32 %v1432, %v1445
        %v1450 = vmul.f32 %v1429, %v1441
        %v1451 = vmul.f32 %v1433, %v1445
        %v1452 = vmul.f32 %v1430, %v1441
        %v1453 = vmul.f32 %v1434, %v1445
        %v1454 = vmul.f32 %v1431, %v1441
        %v1455 = vmul.f32 %v1435, %v1445
        %1456 = vst [vmem:[#allocation2 + $0x180] sm:$0xff] %v1448
        %1457 = vst [vmem:[#allocation2 + $0x188] sm:$0xff] %v1449
        %1458 = vst [vmem:[#allocation2 + $0x190] sm:$0xff] %v1450
        %1459 = vst [vmem:[#allocation2 + $0x198] sm:$0xff] %v1451
        %1460 = vst [vmem:[#allocation2 + $0x1a0] sm:$0xff] %v1452
        %1461 = vst [vmem:[#allocation2 + $0x1a8] sm:$0xff] %v1453
        %1462 = vst [vmem:[#allocation2 + $0x1b0] sm:$0xff] %v1454
        %1463 = vst [vmem:[#allocation2 + $0x1b8] sm:$0xff] %v1455
        %1464 = vrot.lane.b32.xlu0 %v1136, 112
        %v1465 = vpop.permute.xlu0 %1464
        %1466 = vrot.lane.b32.xlu0 %v1138, 112
        %v1467 = vpop.permute.xlu0 %1466
        %1468 = vrot.lane.b32.xlu0 %v1140, 112
        %v1469 = vpop.permute.xlu0 %1468
        %1470 = vrot.lane.b32.xlu0 %v1142, 112
        %v1471 = vpop.permute.xlu0 %1470
        %1472 = vrot.lane.b32.xlu0 %v1137, 112
        %v1473 = vpop.permute.xlu0 %1472
        %1474 = vrot.lane.b32.xlu0 %v1139, 112
        %v1475 = vpop.permute.xlu0 %1474
        %1476 = vrot.lane.b32.xlu0 %v1141, 112
        %v1477 = vpop.permute.xlu0 %1476
        %1478 = vrot.lane.b32.xlu0 %v1143, 112
        %v1479 = vpop.permute.xlu0 %1478
        %v1480 = vsel %vm745, %v1465, %v1473
        %v1481 = vsel %vm745, %v1467, %v1475
        %v1482 = vsel %vm745, %v1469, %v1477
        %v1483 = vsel %vm745, %v1471, %v1479
        %v1484 = vsel %vm745, %v1473, %v1465
        %v1485 = vsel %vm745, %v1475, %v1467
        %v1486 = vsel %vm745, %v1477, %v1469
        %v1487 = vsel %vm745, %v1479, %v1471
        %v1488 = vld [vmem:[%s754] sm:$0x3]
        %v1490 = vlaneseq
        %v1491 = vshrl.u32 %v1490, 7
        %v1492 = vsub.s32 0, %v1491
        %v1493 = vrot.slane %v1488, %v1492
        %v1494 = vlaneseq
        %v1495 = vshrl.u32 %v1494, 7
        %v1496 = vsub.s32 1, %v1495
        %v1497 = vrot.slane %v1488, %v1496
        %v1500 = vmul.f32 %v1480, %v1493
        %v1501 = vmul.f32 %v1484, %v1497
        %v1502 = vmul.f32 %v1481, %v1493
        %v1503 = vmul.f32 %v1485, %v1497
        %v1504 = vmul.f32 %v1482, %v1493
        %v1505 = vmul.f32 %v1486, %v1497
        %v1506 = vmul.f32 %v1483, %v1493
        %v1507 = vmul.f32 %v1487, %v1497
        %1508 = vst [vmem:[#allocation2 + $0x1c0] sm:$0xff] %v1500
        %1509 = vst [vmem:[#allocation2 + $0x1c8] sm:$0xff] %v1501
        %1510 = vst [vmem:[#allocation2 + $0x1d0] sm:$0xff] %v1502
        %1511 = vst [vmem:[#allocation2 + $0x1d8] sm:$0xff] %v1503
        %1512 = vst [vmem:[#allocation2 + $0x1e0] sm:$0xff] %v1504
        %1513 = vst [vmem:[#allocation2 + $0x1e8] sm:$0xff] %v1505
        %1514 = vst [vmem:[#allocation2 + $0x1f0] sm:$0xff] %v1506
        %1515 = vst [vmem:[#allocation2 + $0x1f8] sm:$0xff] %v1507
        %1516 = vrot.lane.b32.xlu0 %v1136, 111
        %v1517 = vpop.permute.xlu0 %1516
        %1518 = vrot.lane.b32.xlu0 %v1138, 111
        %v1519 = vpop.permute.xlu0 %1518
        %1520 = vrot.lane.b32.xlu0 %v1140, 111
        %v1521 = vpop.permute.xlu0 %1520
        %1522 = vrot.lane.b32.xlu0 %v1142, 111
        %v1523 = vpop.permute.xlu0 %1522
        %1524 = vrot.lane.b32.xlu0 %v1137, 111
        %v1525 = vpop.permute.xlu0 %1524
        %1526 = vrot.lane.b32.xlu0 %v1139, 111
        %v1527 = vpop.permute.xlu0 %1526
        %1528 = vrot.lane.b32.xlu0 %v1141, 111
        %v1529 = vpop.permute.xlu0 %1528
        %1530 = vrot.lane.b32.xlu0 %v1143, 111
        %v1531 = vpop.permute.xlu0 %1530
        %v1532 = vsel %vm799, %v1517, %v1525
        %v1533 = vsel %vm799, %v1519, %v1527
        %v1534 = vsel %vm799, %v1521, %v1529
        %v1535 = vsel %vm799, %v1523, %v1531
        %v1536 = vsel %vm799, %v1525, %v1517
        %v1537 = vsel %vm799, %v1527, %v1519
        %v1538 = vsel %vm799, %v1529, %v1521
        %v1539 = vsel %vm799, %v1531, %v1523
        %v1540 = vld [vmem:[%s808] sm:$0x3]
        %v1542 = vlaneseq
        %v1543 = vshrl.u32 %v1542, 7
        %v1544 = vsub.s32 0, %v1543
        %v1545 = vrot.slane %v1540, %v1544
        %v1546 = vlaneseq
        %v1547 = vshrl.u32 %v1546, 7
        %v1548 = vsub.s32 1, %v1547
        %v1549 = vrot.slane %v1540, %v1548
        %v1552 = vmul.f32 %v1532, %v1545
        %v1553 = vmul.f32 %v1536, %v1549
        %v1554 = vmul.f32 %v1533, %v1545
        %v1555 = vmul.f32 %v1537, %v1549
        %v1556 = vmul.f32 %v1534, %v1545
        %v1557 = vmul.f32 %v1538, %v1549
        %v1558 = vmul.f32 %v1535, %v1545
        %v1559 = vmul.f32 %v1539, %v1549
        %1560 = vst [vmem:[#allocation2 + $0x200] sm:$0xff] %v1552
        %1561 = vst [vmem:[#allocation2 + $0x208] sm:$0xff] %v1553
        %1562 = vst [vmem:[#allocation2 + $0x210] sm:$0xff] %v1554
        %1563 = vst [vmem:[#allocation2 + $0x218] sm:$0xff] %v1555
        %1564 = vst [vmem:[#allocation2 + $0x220] sm:$0xff] %v1556
        %1565 = vst [vmem:[#allocation2 + $0x228] sm:$0xff] %v1557
        %1566 = vst [vmem:[#allocation2 + $0x230] sm:$0xff] %v1558
        %1567 = vst [vmem:[#allocation2 + $0x238] sm:$0xff] %v1559
        %v1568 = vld [vmem:[#allocation6] sm:$0xff]
        %v1569 = vld [vmem:[#allocation6 + $0x8] sm:$0xff]
        %v1570 = vld [vmem:[#allocation6 + $0x10] sm:$0xff]
        %v1571 = vld [vmem:[#allocation6 + $0x18] sm:$0xff]
        %v1572 = vld [vmem:[#allocation6 + $0x20] sm:$0xff]
        %v1573 = vld [vmem:[#allocation6 + $0x28] sm:$0xff]
        %v1574 = vld [vmem:[#allocation6 + $0x30] sm:$0xff]
        %v1575 = vld [vmem:[#allocation6 + $0x38] sm:$0xff]
        %v1576 = vld [vmem:[#allocation6 + $0x40] sm:$0xff]
        %v1577 = vld [vmem:[#allocation6 + $0x48] sm:$0xff]
        %v1578 = vld [vmem:[#allocation6 + $0x50] sm:$0xff]
        %v1579 = vld [vmem:[#allocation6 + $0x58] sm:$0xff]
        %v1580 = vld [vmem:[#allocation2] sm:$0xff]
        %v1581 = vld [vmem:[#allocation2 + $0x8] sm:$0xff]
        %v1582 = vld [vmem:[#allocation2 + $0x10] sm:$0xff]
        %v1583 = vld [vmem:[#allocation2 + $0x18] sm:$0xff]
        %v1584 = vld [vmem:[#allocation2 + $0x20] sm:$0xff]
        %v1585 = vld [vmem:[#allocation2 + $0x28] sm:$0xff]
        %v1586 = vld [vmem:[#allocation2 + $0x30] sm:$0xff]
        %v1587 = vld [vmem:[#allocation2 + $0x38] sm:$0xff]
        %v1588 = vld [vmem:[#allocation2 + $0x40] sm:$0xff]
        %v1589 = vld [vmem:[#allocation2 + $0x48] sm:$0xff]
        %v1590 = vld [vmem:[#allocation2 + $0x50] sm:$0xff]
        %v1591 = vld [vmem:[#allocation2 + $0x58] sm:$0xff]
        %v1592 = vld [vmem:[#allocation2 + $0x60] sm:$0xff]
        %v1593 = vld [vmem:[#allocation2 + $0x68] sm:$0xff]
        %v1594 = vld [vmem:[#allocation2 + $0x70] sm:$0xff]
        %v1595 = vld [vmem:[#allocation2 + $0x78] sm:$0xff]
        %v1596 = vld [vmem:[#allocation2 + $0x80] sm:$0xff]
        %v1597 = vld [vmem:[#allocation2 + $0x88] sm:$0xff]
        %v1598 = vld [vmem:[#allocation2 + $0x90] sm:$0xff]
        %v1599 = vld [vmem:[#allocation2 + $0x98] sm:$0xff]
        %v1600 = vld [vmem:[#allocation2 + $0xa0] sm:$0xff]
        %v1601 = vld [vmem:[#allocation2 + $0xa8] sm:$0xff]
        %v1602 = vld [vmem:[#allocation2 + $0xb0] sm:$0xff]
        %v1603 = vld [vmem:[#allocation2 + $0xb8] sm:$0xff]
        %v1604 = vld [vmem:[#allocation2 + $0xc0] sm:$0xff]
        %v1605 = vld [vmem:[#allocation2 + $0xc8] sm:$0xff]
        %v1606 = vld [vmem:[#allocation2 + $0xd0] sm:$0xff]
        %v1607 = vld [vmem:[#allocation2 + $0xd8] sm:$0xff]
        %v1608 = vld [vmem:[#allocation2 + $0xe0] sm:$0xff]
        %v1609 = vld [vmem:[#allocation2 + $0xe8] sm:$0xff]
        %v1610 = vld [vmem:[#allocation2 + $0xf0] sm:$0xff]
        %v1611 = vld [vmem:[#allocation2 + $0xf8] sm:$0xff]
        %v1612 = vld [vmem:[#allocation2 + $0x100] sm:$0xff]
        %v1613 = vld [vmem:[#allocation2 + $0x108] sm:$0xff]
        %v1614 = vld [vmem:[#allocation2 + $0x110] sm:$0xff]
        %v1615 = vld [vmem:[#allocation2 + $0x118] sm:$0xff]
        %v1616 = vld [vmem:[#allocation2 + $0x120] sm:$0xff]
        %v1617 = vld [vmem:[#allocation2 + $0x128] sm:$0xff]
        %v1618 = vld [vmem:[#allocation2 + $0x130] sm:$0xff]
        %v1619 = vld [vmem:[#allocation2 + $0x138] sm:$0xff]
        %v1620 = vld [vmem:[#allocation2 + $0x140] sm:$0xff]
        %v1621 = vld [vmem:[#allocation2 + $0x148] sm:$0xff]
        %v1622 = vld [vmem:[#allocation2 + $0x150] sm:$0xff]
        %v1623 = vld [vmem:[#allocation2 + $0x158] sm:$0xff]
        %v1624 = vld [vmem:[#allocation2 + $0x160] sm:$0xff]
        %v1625 = vld [vmem:[#allocation2 + $0x168] sm:$0xff]
        %v1626 = vld [vmem:[#allocation2 + $0x170] sm:$0xff]
        %v1627 = vld [vmem:[#allocation2 + $0x178] sm:$0xff]
        %v1628 = vld [vmem:[#allocation2 + $0x180] sm:$0xff]
        %v1629 = vld [vmem:[#allocation2 + $0x188] sm:$0xff]
        %v1630 = vld [vmem:[#allocation2 + $0x190] sm:$0xff]
        %v1631 = vld [vmem:[#allocation2 + $0x198] sm:$0xff]
        %v1632 = vld [vmem:[#allocation2 + $0x1a0] sm:$0xff]
        %v1633 = vld [vmem:[#allocation2 + $0x1a8] sm:$0xff]
        %v1634 = vld [vmem:[#allocation2 + $0x1b0] sm:$0xff]
        %v1635 = vld [vmem:[#allocation2 + $0x1b8] sm:$0xff]
        %v1636 = vld [vmem:[#allocation2 + $0x1c0] sm:$0xff]
        %v1637 = vld [vmem:[#allocation2 + $0x1c8] sm:$0xff]
        %v1638 = vld [vmem:[#allocation2 + $0x1d0] sm:$0xff]
        %v1639 = vld [vmem:[#allocation2 + $0x1d8] sm:$0xff]
        %v1640 = vld [vmem:[#allocation2 + $0x1e0] sm:$0xff]
        %v1641 = vld [vmem:[#allocation2 + $0x1e8] sm:$0xff]
        %v1642 = vld [vmem:[#allocation2 + $0x1f0] sm:$0xff]
        %v1643 = vld [vmem:[#allocation2 + $0x1f8] sm:$0xff]
        %v1644 = vld [vmem:[#allocation2 + $0x200] sm:$0xff]
        %v1645 = vld [vmem:[#allocation2 + $0x208] sm:$0xff]
        %v1646 = vld [vmem:[#allocation2 + $0x210] sm:$0xff]
        %v1647 = vld [vmem:[#allocation2 + $0x218] sm:$0xff]
        %v1648 = vld [vmem:[#allocation2 + $0x220] sm:$0xff]
        %v1649 = vld [vmem:[#allocation2 + $0x228] sm:$0xff]
        %v1650 = vld [vmem:[#allocation2 + $0x230] sm:$0xff]
        %v1651 = vld [vmem:[#allocation2 + $0x238] sm:$0xff]
        %v1652 = vld [vmem:[%s5] sm:$0xff]
        %v1653 = vld [vmem:[%s5 + $0x8] sm:$0xff]
        %v1654 = vld [vmem:[%s5 + $0x10] sm:$0xff]
        %v1655 = vld [vmem:[%s5 + $0x18] sm:$0xff]
        %1657 = vset.pattern.permute.xlu0 0
        %1658 = vperm.xlu0 %1657, %v1652
        %v1659 = vpop.permute.xlu0 %1658
        %1662 = vset.pattern.permute.xlu0 0
        %1663 = vperm.xlu0 %1662, %v1653
        %v1664 = vpop.permute.xlu0 %1663
        %1667 = vset.pattern.permute.xlu0 0
        %1668 = vperm.xlu0 %1667, %v1654
        %v1669 = vpop.permute.xlu0 %1668
        %1672 = vset.pattern.permute.xlu0 0
        %1673 = vperm.xlu0 %1672, %v1655
        %v1674 = vpop.permute.xlu0 %1673
        %v1677 = vsel %vm945, %v1570, 0
        %v1680 = vsel %vm945, %v1573, 0
        %v1683 = vsel %vm945, %v1576, 0
        %v1686 = vsel %vm945, %v1579, 0
        %1688 = vmatprep.subr.mxu0 %v1581
        %1689 = vmatpush1.msra.mxu0 %v1580
        %1690 = vmatprep.subr.mxu0 %v1583
        %1691 = vmatpush1.msra.mxu0 %v1582
        %1692 = vmatprep.subr.mxu0 %v1585
        %1693 = vmatpush1.msra.mxu0 %v1584
        %1694 = vmatprep.subr.mxu0 %v1587
        %1695 = vmatpush1.msra.mxu0 %v1586
        %1696 = vmatprep.subr.mxu0 %v1589
        %1697 = vmatpush1.msra.mxu0 %v1588
        %1698 = vmatprep.subr.mxu0 %v1591
        %1699 = vmatpush1.msra.mxu0 %v1590
        %1700 = vmatprep.subr.mxu0 %v1593
        %1701 = vmatpush1.msra.mxu0 %v1592
        %1702 = vmatprep.subr.mxu0 %v1595
        %1703 = vmatpush1.msra.mxu0 %v1594
        %1704 = vmatprep.subr.mxu0 %v1597
        %1705 = vmatpush1.msra.mxu0 %v1596
        %1706 = vmatprep.subr.mxu0 %v1599
        %1707 = vmatpush1.msra.mxu0 %v1598
        %1708 = vmatprep.subr.mxu0 %v1601
        %1709 = vmatpush1.msra.mxu0 %v1600
        %1710 = vmatprep.subr.mxu0 %v1603
        %1711 = vmatpush1.msra.mxu0 %v1602
        %1712 = vmatprep.subr.mxu0 %v1605
        %1713 = vmatpush1.msra.mxu0 %v1604
        %1714 = vmatprep.subr.mxu0 %v1607
        %1715 = vmatpush1.msra.mxu0 %v1606
        %1716 = vmatprep.subr.mxu0 %v1609
        %1717 = vmatpush1.msra.mxu0 %v1608
        %1718 = vmatprep.subr.mxu0 %v1611
        %1719 = vmatpush1.msra.mxu0 %v1610
        %1720 = vmatprep.subr.mxu0 %v1613
        %1721 = vmatpush1.msra.mxu0 %v1612
        %1722 = vmatprep.subr.mxu0 %v1615
        %1723 = vmatpush1.msra.mxu0 %v1614
        %1724 = vmatprep.subr.mxu0 %v1617
        %1725 = vmatpush1.msra.mxu0 %v1616
        %1726 = vmatprep.subr.mxu0 %v1619
        %1727 = vmatpush1.msra.mxu0 %v1618
        %1728 = vmatprep.subr.mxu0 %v1621
        %1729 = vmatpush1.msra.mxu0 %v1620
        %1730 = vmatprep.subr.mxu0 %v1623
        %1731 = vmatpush1.msra.mxu0 %v1622
        %1732 = vmatprep.subr.mxu0 %v1625
        %1733 = vmatpush1.msra.mxu0 %v1624
        %1734 = vmatprep.subr.mxu0 %v1627
        %1735 = vmatpush1.msra.mxu0 %v1626
        %1736 = vmatprep.subr.mxu0 %v1629
        %1737 = vmatpush1.msra.mxu0 %v1628
        %1738 = vmatprep.subr.mxu0 %v1631
        %1739 = vmatpush1.msra.mxu0 %v1630
        %1740 = vmatprep.subr.mxu0 %v1633
        %1741 = vmatpush1.msra.mxu0 %v1632
        %1742 = vmatprep.subr.mxu0 %v1635
        %1743 = vmatpush1.msra.mxu0 %v1634
        %1744 = vmatprep.subr.mxu0 %v1637
        %1745 = vmatpush1.msra.mxu0 %v1636
        %1746 = vmatprep.subr.mxu0 %v1639
        %1747 = vmatpush1.msra.mxu0 %v1638
        %1748 = vmatprep.subr.mxu0 %v1641
        %1749 = vmatpush1.msra.mxu0 %v1640
        %1750 = vmatprep.subr.mxu0 %v1643
        %1751 = vmatpush1.msra.mxu0 %v1642
        %1752 = vmatprep.mubr.f32.mxu0 %v1569
        %1753 = vmatmul.mubr.f32.gmra.mrb[0].mxu0 %v1568
        %v1754 = vpop.f32.mrb[0].mxu0
        %v1755 = vadd.f32 %v1659, %v1754
        %v1756 = vpop.f32.mrb[0].mxu0
        %v1757 = vadd.f32 %v1659, %v1756
        %1758 = vmatprep.mubr.f32.mxu0 %v1572
        %1759 = vmatmul.mubr.f32.gmra.mrb[0].mxu0 %v1571
        %v1760 = vpop.f32.mrb[0].mxu0
        %v1761 = vadd.f32 %v1664, %v1760
        %v1762 = vpop.f32.mrb[0].mxu0
        %v1763 = vadd.f32 %v1664, %v1762
        %1764 = vmatprep.mubr.f32.mxu0 %v1575
        %1765 = vmatmul.mubr.f32.gmra.mrb[0].mxu0 %v1574
        %v1766 = vpop.f32.mrb[0].mxu0
        %v1767 = vadd.f32 %v1669, %v1766
        %v1768 = vpop.f32.mrb[0].mxu0
        %v1769 = vadd.f32 %v1669, %v1768
        %1770 = vmatprep.mubr.f32.mxu0 %v1578
        %1771 = vmatmul.mubr.f32.gmra.mrb[0].mxu0 %v1577
        %v1772 = vpop.f32.mrb[0].mxu0
        %v1773 = vadd.f32 %v1674, %v1772
        %v1774 = vpop.f32.mrb[0].mxu0
        %v1775 = vadd.f32 %v1674, %v1774
        %1776 = vdwg.mxu0
        %1777 = vmatprep.subr.mxu0 %v1645
        %1778 = vmatpush1.msra.mxu0 %v1644
        %1779 = vmatprep.subr.mxu0 %v1647
        %1780 = vmatpush1.msra.mxu0 %v1646
        %1781 = vmatprep.subr.mxu0 %v1649
        %1782 = vmatpush1.msra.mxu0 %v1648
        %1783 = vmatprep.subr.mxu0 %v1651
        %1784 = vmatpush1.msra.mxu0 %v1650
        %1785 = vmatprep.subr.mxu0 0.0
        %1786 = vmatpush1.msra.mxu0 0.0
        %1787 = vmatprep.subr.mxu0 0.0
        %1788 = vmatpush1.msra.mxu0 0.0
        %1789 = vmatprep.subr.mxu0 0.0
        %1790 = vmatpush1.msra.mxu0 0.0
        %1791 = vmatprep.subr.mxu0 0.0
        %1792 = vmatpush1.msra.mxu0 0.0
        %1793 = vmatprep.subr.mxu0 0.0
        %1794 = vmatpush1.msra.mxu0 0.0
        %1795 = vmatprep.subr.mxu0 0.0
        %1796 = vmatpush1.msra.mxu0 0.0
        %1797 = vmatprep.subr.mxu0 0.0
        %1798 = vmatpush1.msra.mxu0 0.0
        %1799 = vmatprep.subr.mxu0 0.0
        %1800 = vmatpush1.msra.mxu0 0.0
        %1801 = vmatprep.subr.mxu0 0.0
        %1802 = vmatpush1.msra.mxu0 0.0
        %1803 = vmatprep.subr.mxu0 0.0
        %1804 = vmatpush1.msra.mxu0 0.0
        %1805 = vmatprep.subr.mxu0 0.0
        %1806 = vmatpush1.msra.mxu0 0.0
        %1807 = vmatprep.subr.mxu0 0.0
        %1808 = vmatpush1.msra.mxu0 0.0
        %1809 = vmatprep.subr.mxu0 0.0
        %1810 = vmatpush1.msra.mxu0 0.0
        %1811 = vmatprep.subr.mxu0 0.0
        %1812 = vmatpush1.msra.mxu0 0.0
        %1813 = vmatprep.subr.mxu0 0.0
        %1814 = vmatpush1.msra.mxu0 0.0
        %1815 = vmatprep.subr.mxu0 0.0
        %1816 = vmatpush1.msra.mxu0 0.0
        %1817 = vmatprep.subr.mxu0 0.0
        %1818 = vmatpush1.msra.mxu0 0.0
        %1819 = vmatprep.subr.mxu0 0.0
        %1820 = vmatpush1.msra.mxu0 0.0
        %1821 = vmatprep.subr.mxu0 0.0
        %1822 = vmatpush1.msra.mxu0 0.0
        %1823 = vmatprep.subr.mxu0 0.0
        %1824 = vmatpush1.msra.mxu0 0.0
        %1825 = vmatprep.subr.mxu0 0.0
        %1826 = vmatpush1.msra.mxu0 0.0
        %1827 = vmatprep.subr.mxu0 0.0
        %1828 = vmatpush1.msra.mxu0 0.0
        %1829 = vmatprep.subr.mxu0 0.0
        %1830 = vmatpush1.msra.mxu0 0.0
        %1831 = vmatprep.subr.mxu0 0.0
        %1832 = vmatpush1.msra.mxu0 0.0
        %1833 = vmatprep.subr.mxu0 0.0
        %1834 = vmatpush1.msra.mxu0 0.0
        %1835 = vmatprep.subr.mxu0 0.0
        %1836 = vmatpush1.msra.mxu0 0.0
        %1837 = vmatprep.subr.mxu0 0.0
        %1838 = vmatpush1.msra.mxu0 0.0
        %1839 = vmatprep.subr.mxu0 0.0
        %1840 = vmatpush1.msra.mxu0 0.0
        %1841 = vmatprep.mubr.f32.mxu0 0.0
        %1842 = vmatmul.mubr.f32.gmra.mrb[0].mxu0 %v1677
        %v1843 = vpop.f32.mrb[0].mxu0
        %v1844 = vadd.f32 %v1755, %v1843
        %v1845 = vpop.f32.mrb[0].mxu0
        %v1846 = vadd.f32 %v1757, %v1845
        %1847 = vmatprep.mubr.f32.mxu0 0.0
        %1848 = vmatmul.mubr.f32.gmra.mrb[0].mxu0 %v1680
        %v1849 = vpop.f32.mrb[0].mxu0
        %v1850 = vadd.f32 %v1761, %v1849
        %v1851 = vpop.f32.mrb[0].mxu0
        %v1852 = vadd.f32 %v1763, %v1851
        %1853 = vmatprep.mubr.f32.mxu0 0.0
        %1854 = vmatmul.mubr.f32.gmra.mrb[0].mxu0 %v1683
        %v1855 = vpop.f32.mrb[0].mxu0
        %v1856 = vadd.f32 %v1767, %v1855
        %v1857 = vpop.f32.mrb[0].mxu0
        %v1858 = vadd.f32 %v1769, %v1857
        %1859 = vmatprep.mubr.f32.mxu0 0.0
        %1860 = vmatmul.mubr.f32.gmra.mrb[0].mxu0 %v1686
        %v1861 = vpop.f32.mrb[0].mxu0
        %v1862 = vadd.f32 %v1773, %v1861
        %v1863 = vpop.f32.mrb[0].mxu0
        %v1864 = vadd.f32 %v1775, %v1863
        %1865 = vdwg.mxu0
        %v1866 = vadd.f32 %v1844, %v1846
        %1867 = vadd.xlane.f32.xlu0 %v1866
        %v1868 = vpop.xlane.xlu0 %1867
        %v1869 = vadd.f32 %v1850, %v1852
        %1870 = vadd.xlane.f32.xlu0 %v1869
        %v1871 = vpop.xlane.xlu0 %1870
        %v1872 = vadd.f32 %v1856, %v1858
        %1873 = vadd.xlane.f32.xlu0 %v1872
        %v1874 = vpop.xlane.xlu0 %1873
        %v1875 = vadd.f32 %v1862, %v1864
        %1876 = vadd.xlane.f32.xlu0 %v1875
        %v1877 = vpop.xlane.xlu0 %1876
        %v1878 = vmul.f32 %v1868, 0.00390625
        %v1879 = vmul.f32 %v1871, 0.00390625
        %v1880 = vmul.f32 %v1874, 0.00390625
        %v1881 = vmul.f32 %v1877, 0.00390625
        %v1882 = vld [vmem:[%s6] sm:$0xff]
        %v1883 = vld [vmem:[%s6 + $0x8] sm:$0xff]
        %v1884 = vld [vmem:[%s6 + $0x10] sm:$0xff]
        %v1885 = vld [vmem:[%s6 + $0x18] sm:$0xff]
        %v1886 = vmul.f32 %v1882, %v1878
        %v1887 = vmul.f32 %v1883, %v1879
        %v1888 = vmul.f32 %v1884, %v1880
        %v1889 = vmul.f32 %v1885, %v1881
        %vm1890 = vcmask 15360
        %v1891 = vsel %vm1890, %v1886, 0.0
        %v1892 = vsel %vm1890, %v1887, 0.0
        %v1893 = vadd.f32 %v1891, %v1892
        %v1894 = vsel %vm1890, %v1888, 0.0
        %v1895 = vadd.f32 %v1893, %v1894
        %v1896 = vsel %vm1890, %v1889, 0.0
        %v1897 = vadd.f32 %v1895, %v1896
        %v1898 = vrot.slane %v1897, 4
        %v1899 = vadd.f32 %v1897, %v1898
        %v1900 = vrot.slane %v1899, 2
        %v1901 = vadd.f32 %v1899, %v1900
        %v1902 = vrot.slane %v1901, 1
        %v1903 = vadd.f32 %v1901, %v1902
        %v1904 = vld [vmem:[%s7] sm:$0x1]
        %v1905 = vadd.f32 %v1903, %v1904
        %v1906 = vmax.f32 %v1905, 0.0
        %v1907 = vld [vmem:[%s8] sm:$0xff]
        %v1908 = vld [vmem:[%s8 + $0x8] sm:$0xff]
        %v1909 = vld [vmem:[%s8 + $0x10] sm:$0xff]
        %v1910 = vld [vmem:[%s8 + $0x18] sm:$0xff]
        %v1911 = vlaneseq
        %v1912 = vshrl.u32 %v1911, 7
        %v1913 = vsub.s32 0, %v1912
        %v1914 = vrot.slane %v1906, %v1913
        %v1915 = vmul.f32 %v1907, %v1914
        %v1916 = vmul.f32 %v1908, %v1914
        %v1917 = vmul.f32 %v1909, %v1914
        %v1918 = vmul.f32 %v1910, %v1914
        %v1919 = vsel %vm1890, %v1915, 0.0
        %1920 = vadd.xlane.f32.xlu0 %v1919
        %v1921 = vpop.xlane.xlu0 %1920
        %v1922 = vsel %vm1890, %v1916, 0.0
        %1923 = vadd.xlane.f32.xlu0 %v1922
        %v1924 = vpop.xlane.xlu0 %1923
        %v1925 = vsel %vm1890, %v1917, 0.0
        %1926 = vadd.xlane.f32.xlu0 %v1925
        %v1927 = vpop.xlane.xlu0 %1926
        %v1928 = vsel %vm1890, %v1918, 0.0
        %1929 = vadd.xlane.f32.xlu0 %v1928
        %v1930 = vpop.xlane.xlu0 %1929
        %v1931 = vld [vmem:[%s9] sm:$0xff]
        %v1932 = vld [vmem:[%s9 + $0x8] sm:$0xff]
        %v1933 = vld [vmem:[%s9 + $0x10] sm:$0xff]
        %v1934 = vld [vmem:[%s9 + $0x18] sm:$0xff]
        %v1935 = vadd.f32 %v1921, %v1931
        %v1936 = vadd.f32 %v1924, %v1932
        %v1937 = vadd.f32 %v1927, %v1933
        %v1938 = vadd.f32 %v1930, %v1934
        %v1939 = vxor.u32 %v1935, 2147483648
        %v1940 = vxor.u32 %v1936, 2147483648
        %v1941 = vxor.u32 %v1937, 2147483648
        %v1942 = vxor.u32 %v1938, 2147483648
        %v1943 = vmul.f32 %v1939, 1.442695
        %v1944 = vpow.pop %v1943
        %v1945 = vmul.f32 %v1940, 1.442695
        %v1946 = vpow.pop %v1945
        %v1947 = vmul.f32 %v1941, 1.442695
        %v1948 = vpow.pop %v1947
        %v1949 = vmul.f32 %v1942, 1.442695
        %v1950 = vpow.pop %v1949
        %v1951 = vadd.f32 %v1944, 1.0
        %v1952 = vadd.f32 %v1946, 1.0
        %v1953 = vadd.f32 %v1948, 1.0
        %v1954 = vadd.f32 %v1950, 1.0
        %v1955 = vrcp.pop %v1951
        %v1956 = vmul.f32 1.0, %v1955
        %v1957 = vrcp.pop %v1952
        %v1958 = vmul.f32 1.0, %v1957
        %v1959 = vrcp.pop %v1953
        %v1960 = vmul.f32 1.0, %v1959
        %v1961 = vrcp.pop %v1954
        %v1962 = vmul.f32 1.0, %v1961
        %1964 = vset.pattern.permute.xlu0 0
        %1965 = vperm.xlu0 %1964, %v1956
        %v1966 = vpop.permute.xlu0 %1965
        %1969 = vset.pattern.permute.xlu0 0
        %1970 = vperm.xlu0 %1969, %v1958
        %v1971 = vpop.permute.xlu0 %1970
        %1974 = vset.pattern.permute.xlu0 0
        %1975 = vperm.xlu0 %1974, %v1960
        %v1976 = vpop.permute.xlu0 %1975
        %1979 = vset.pattern.permute.xlu0 0
        %1980 = vperm.xlu0 %1979, %v1962
        %v1981 = vpop.permute.xlu0 %1980
        %v1983 = vmul.f32 %v1844, %v1966
        %v1984 = vmul.f32 %v1846, %v1966
        %v1985 = vmul.f32 %v1850, %v1971
        %v1986 = vmul.f32 %v1852, %v1971
        %v1987 = vmul.f32 %v1856, %v1976
        %v1988 = vmul.f32 %v1858, %v1976
        %v1989 = vmul.f32 %v1862, %v1981
        %v1990 = vmul.f32 %v1864, %v1981
        %v1991 = vadd.f32 %v1983, %v388
        %v1992 = vadd.f32 %v1984, %v389
        %v1993 = vadd.f32 %v1985, %v390
        %v1994 = vadd.f32 %v1986, %v391
        %v1995 = vadd.f32 %v1987, %v392
        %v1996 = vadd.f32 %v1988, %v393
        %v1997 = vadd.f32 %v1989, %v394
        %v1998 = vadd.f32 %v1990, %v395
        %1999 = vst [vmem:[%s382] sm:$0xff] %v1991
        %2000 = vst [vmem:[%s382 + $0x8] sm:$0xff] %v1992
        %2001 = vst [vmem:[%s382 + $0x10] sm:$0xff] %v1993
        %2002 = vst [vmem:[%s382 + $0x18] sm:$0xff] %v1994
        %2003 = vst [vmem:[%s382 + $0x20] sm:$0xff] %v1995
        %2004 = vst [vmem:[%s382 + $0x28] sm:$0xff] %v1996
        %2005 = vst [vmem:[%s382 + $0x30] sm:$0xff] %v1997
        %2006 = vst [vmem:[%s382 + $0x38] sm:$0xff] %v1998
        %s2007 = sand.u32 %s249, 1
        %s2008 = scalar_lea.sflag [#allocation5], %s2007
        %s2009 = sand.u32 %s249, 1
        %s2010 = smul.addr %s2009, 64
        %s2011 = scalar_lea.vmem [#allocation8], %s2010
        // Predicated region
        $region69: #{tpu_custom_call.1} parent=59 // pred_check
          %p2012 = pneg %p259
        $region70: #{tpu_custom_call.1} parent=59 // pred_check_branch
          %2014 = sbr.rel (%p2012) target = $region72
        $region71: #{tpu_custom_call.1} parent=59 // pred_region
          %s2016 = ssub.s32 1024, 1024
          %2017 = vsyncadd %s2008, %s2016
          %s2018 = smul.addr %s26, 8
          %s2019 = smul.addr %s2018, 128
          %s2020 = scalar_lea.hbm %s10, %s2019
          %s2021 = sshll.u32 %s2011, 4
          %s2022 = int_to_ptr.vmem [resolvable:$true] %s2021
          %2027 = dma.vmem_to_hbm [thread:$0]  %s2022, 1024, %s2020, %s2008, 256, 256, 16
        $region72: #{tpu_custom_call.1} parent=59 // pred_fallthru
          _
      $region60: #{tpu_custom_call.1} parent=5 // pred_fallthru
        _
      %p2028 = scmp.le.s32.totalorder 2, %s21
      // Predicated region
      $region73: #{tpu_custom_call.1} parent=5 // pred_check
        %p2029 = pneg %p2028
      $region74: #{tpu_custom_call.1} parent=5 // pred_check_branch
        %2031 = sbr.rel (%p2029) target = $region76
      $region75: #{tpu_custom_call.1} parent=5 // pred_region
        %s2032 = ssub.s32 %s21, 2
        // Predicated region
        $region77: #{tpu_custom_call.1} parent=75 // pred_check
          %p2033 = pneg %p265
        $region78: #{tpu_custom_call.1} parent=75 // pred_check_branch
          %2035 = sbr.rel (%p2033) target = $region80
        $region79: #{tpu_custom_call.1} parent=75 // pred_region
          %s2036 = sand.u32 %s250, 1
          %s2037 = scalar_lea.sflag [#allocation5], %s2036
          %s2038 = sand.u32 %s250, 1
          %s2039 = smul.addr %s2038, 64
          %s2040 = scalar_lea.vmem [#allocation8], %s2039
          %2041 = dma.done %s2037, 1024
        $region80: #{tpu_custom_call.1} parent=75 // pred_fallthru
          _
      $region76: #{tpu_custom_call.1} parent=5 // pred_fallthru
        _
    $region6: #{tpu_custom_call.1} parent=1 // loop_footer
      %s25 = sadd.s32 1, %s21
    $region7: #{tpu_custom_call.1} parent=1 // loop_footer_branch
      %20 = sbr.rel target = $region3
    $region8: #{tpu_custom_call.1} parent=1 // loop_exit
      _
    %2042 = vsyncpa [#allocation4], 1
    %s2043 = scalar_lea.sflag [#allocation4], 1
    %2044 = vsyncpa %s2043, 1
    %2045 = vsyncpa [#allocation7], 1
    %2046 = vsyncpa [#allocation5], 1
    %s2047 = scalar_lea.sflag [#allocation5], 1
    %2048 = vsyncpa %s2047, 1

</llo_original>
